<compile_context>
chip_gen: v5e
topology: v5e:2x2
jax: 0.10.0
libtpu: 0.0.40
codegen_flags: <defaults>
</compile_context>

<pallas_src>
import functools
import math

import jax
import jax.numpy as jnp
import numpy as np
from jax import lax
from jax.experimental import pallas as pl
from jax.experimental.pallas import tpu as pltpu

EPS = 1e-5  # PyTorch LayerNorm default


def _layernorm(x, w, b):
    mu = jnp.mean(x, axis=-1, keepdims=True)
    var = jnp.mean((x - mu) ** 2, axis=-1, keepdims=True)
    return (x - mu) * jax.lax.rsqrt(var + EPS) * w + b


# ------------------------------ fused kernel --------------------------------

def fused_head_kernel(num_heads, num_layers,
                      x_ref,            # (B, S, E)
                      w_attn_ref,       # (L, 4, E, E)   [Wq*scale, Wk, Wv, Wo], (in,out)
                      w1_ref,           # (L, E, F)
                      w2_ref,           # (L, F, E)
                      vec_ref,          # (L, 10, F)     packed biases / LN params
                      fcw_ref,          # (E, Cp)        lane-dense padded fc weight
                      fcb_ref,          # (1, Cp)
                      o_ref):           # (B, S, Cp)
    B, S, E = x_ref.shape
    H = num_heads
    Dh = E // H
    F = w1_ref.shape[-1]
    R = B * S

    # Flatten (B, S) rows for all dense layers / layernorms (leading-dim
    # reshape only; lane layout untouched).
    x2 = x_ref[...].reshape(R, E)

    for l in range(num_layers):                 # static unroll, L small
        wa = w_attn_ref[l]                      # (4, E, E), resident in VMEM
        vl = vec_ref[l]                         # (10, F)
        bq   = vl[0:1, 0:E]
        bk   = vl[1:2, 0:E]
        bv   = vl[2:3, 0:E]
        bo   = vl[3:4, 0:E]
        ln1w = vl[4:5, 0:E]
        ln1b = vl[5:6, 0:E]
        ln2w = vl[6:7, 0:E]
        ln2b = vl[7:8, 0:E]
        b2   = vl[8:9, 0:E]
        b1   = vl[9:10, 0:F]

        # ---- multi-head self-attention (post-LN layer, PyTorch default) ----
        # Separate Q/K/V projections: full-width (R,E)x(E,E) MXU matmuls, no
        # lane slicing of a fused qkv activation. Q is pre-scaled by 1/sqrt(Dh).
        q = jnp.dot(x2, wa[0], preferred_element_type=jnp.float32) + bq
        k = jnp.dot(x2, wa[1], preferred_element_type=jnp.float32) + bk
        v = jnp.dot(x2, wa[2], preferred_element_type=jnp.float32) + bv

        # Head split: H lane slices per tensor, stacked into one (H*B, S, Dh)
        # batch so attention is TWO batched dot_generals (instead of 2*B*H
        # tiny matmuls + per-batch concats).
        q3 = q.reshape(B, S, E)
        k3 = k.reshape(B, S, E)
        v3 = v.reshape(B, S, E)

        def to_heads(t3):
            th = jnp.stack([t3[:, :, h * Dh:(h + 1) * Dh] for h in range(H)],
                           axis=0)              # (H, B, S, Dh)
            return th.reshape(H * B, S, Dh)     # leading-dim merge only

        qh = to_heads(q3)
        kh = to_heads(k3)
        vh = to_heads(v3)

        s = jnp.einsum('bqd,bkd->bqk', qh, kh,
                       preferred_element_type=jnp.float32)        # (H*B, S, S)
        s = s - jnp.max(s, axis=-1, keepdims=True)
        p = jnp.exp(s)
        p = p * pl.reciprocal(jnp.sum(p, axis=-1, keepdims=True), approx=True)
        o = jnp.einsum('bqk,bkd->bqd', p, vh,
                       preferred_element_type=jnp.float32)        # (H*B, S, Dh)

        o4 = o.reshape(H, B, S, Dh)             # leading-dim split only
        attn = jnp.concatenate([o4[h] for h in range(H)], axis=-1)  # (B, S, E)
        attn = attn.reshape(R, E)
        attn = jnp.dot(attn, wa[3], preferred_element_type=jnp.float32) + bo
        h1 = _layernorm(x2 + attn, ln1w, ln1b)

        # ---- feed-forward (dim_feedforward=512, ReLU) ----
        ff = jnp.dot(h1, w1_ref[l], preferred_element_type=jnp.float32) + b1
        ff = jnp.maximum(ff, 0.0)
        ff = jnp.dot(ff, w2_ref[l], preferred_element_type=jnp.float32) + b2
        x2 = _layernorm(h1 + ff, ln2w, ln2b)

    # ---- final fc, lane-dense (128-padded) unmasked store ----
    out = jnp.dot(x2, fcw_ref[...], preferred_element_type=jnp.float32) + fcb_ref[...]
    o_ref[...] = out.reshape(B, S, -1)


# ------------------------------- weight prep ---------------------------------

def prep_weights(layer_params, fc_params, num_heads, num_classes):
    """Split W_qkv into Q/K/V, transpose everything to (in,out), fold the
    1/sqrt(Dh) softmax scale into Q, pack all per-layer vectors into one slab,
    and pad the fc output dim to a lane-dense multiple of 128."""
    E = layer_params[0]["wqkv"].shape[1]
    F = layer_params[0]["w1"].shape[0]
    assert F >= E
    Dh = E // num_heads
    scale = jnp.float32(1.0 / math.sqrt(Dh))

    w_attn, w1, w2, vecs = [], [], [], []

    def pad_row(v):                 # (E,) -> (F,)
        return jnp.zeros((F,), jnp.float32).at[:E].set(v)

    for p in layer_params:
        wq_t = p["wqkv"][0:E, :].T * scale
        wk_t = p["wqkv"][E:2 * E, :].T
        wv_t = p["wqkv"][2 * E:3 * E, :].T
        wo_t = p["wo"].T
        w_attn.append(jnp.stack([wq_t, wk_t, wv_t, wo_t]))          # (4,E,E)
        w1.append(p["w1"].T)                                         # (E,F)
        w2.append(p["w2"].T)                                         # (F,E)
        vecs.append(jnp.stack([
            pad_row(p["bqkv"][0, 0:E] * scale),      # 0: bq (scaled)
            pad_row(p["bqkv"][0, E:2 * E]),          # 1: bk
            pad_row(p["bqkv"][0, 2 * E:3 * E]),      # 2: bv
            pad_row(p["bo"][0]),                     # 3: bo
            pad_row(p["ln1w"][0]),                   # 4: ln1 weight
            pad_row(p["ln1b"][0]),                   # 5: ln1 bias
            pad_row(p["ln2w"][0]),                   # 6: ln2 weight
            pad_row(p["ln2b"][0]),                   # 7: ln2 bias
            pad_row(p["b2"][0]),                     # 8: b2
            p["b1"][0],                              # 9: b1 (full F width)
        ]))                                                          # (10,F)

    w_attn = jnp.stack(w_attn)           # (L,4,E,E)
    w1 = jnp.stack(w1)                   # (L,E,F)
    w2 = jnp.stack(w2)                   # (L,F,E)
    vecs = jnp.stack(vecs)               # (L,10,F)

    c_pad = ((num_classes + 127) // 128) * 128
    fcw_t = jnp.zeros((E, c_pad), jnp.float32).at[:, :num_classes].set(fc_params["w"].T)
    fcb = jnp.zeros((1, c_pad), jnp.float32).at[0, :num_classes].set(fc_params["b"][0])

    return (w_attn, w1, w2, vecs, fcw_t, fcb), c_pad


# --------------------------------- wrapper ------------------------------------

def transformer_head_forward(x, layer_params, fc_params, num_heads, num_classes):
    B, S, E = x.shape
    L = len(layer_params)
    weights, c_pad = prep_weights(layer_params, fc_params, num_heads, num_classes)

    # Single invocation (no grid): whole batch + all stacked layer weights live
    # in VMEM for the full forward; zero per-step pipeline overhead.
    vmem = pl.BlockSpec(memory_space=pltpu.MemorySpace.VMEM)
    out_pad = pl.pallas_call(
        functools.partial(fused_head_kernel, num_heads, L),
        out_shape=jax.ShapeDtypeStruct((B, S, c_pad), jnp.float32),
        in_specs=[vmem] * (1 + len(weights)),
        out_specs=vmem,
    )(x, *weights)
    return out_pad[..., :num_classes]


# --------------------------- parameter creation -------------------------------

def make_params(key, embed_dim, num_heads, num_layers, num_classes, dim_ff=512):
    layers = []
    for _ in range(num_layers):
        key, k0, k1, k2, k3, k4, k5 = jax.random.split(key, 7)
        layers.append(dict(
            wqkv=0.02 * jax.random.normal(k0, (3 * embed_dim, embed_dim), jnp.float32),
            bqkv=0.02 * jax.random.normal(k1, (1, 3 * embed_dim), jnp.float32),
            wo=0.02 * jax.random.normal(k2, (embed_dim, embed_dim), jnp.float32),
            bo=jnp.zeros((1, embed_dim), jnp.float32),
            ln1w=jnp.ones((1, embed_dim), jnp.float32),
            ln1b=jnp.zeros((1, embed_dim), jnp.float32),
            w1=0.02 * jax.random.normal(k3, (dim_ff, embed_dim), jnp.float32),
            b1=0.02 * jax.random.normal(k4, (1, dim_ff), jnp.float32),
            w2=0.02 * jax.random.normal(k5, (embed_dim, dim_ff), jnp.float32),
            b2=jnp.zeros((1, embed_dim), jnp.float32),
            ln2w=jnp.ones((1, embed_dim), jnp.float32),
            ln2b=jnp.zeros((1, embed_dim), jnp.float32),
        ))
    key, kf1, kf2 = jax.random.split(key, 3)
    fc = dict(w=0.02 * jax.random.normal(kf1, (num_classes, embed_dim), jnp.float32),
              b=0.02 * jax.random.normal(kf2, (1, num_classes), jnp.float32))
    return layers, fc


# ---------------------------- pure-JAX reference -------------------------------

def ref_forward(x, layers, fc, num_heads):
    for p in layers:
        B, S, E = x.shape
        Dh = E // num_heads
        qkv = x @ p["wqkv"].T + p["bqkv"][0]
        q, k, v = jnp.split(qkv, 3, axis=-1)
        q = q.reshape(B, S, num_heads, Dh).transpose(0, 2, 1, 3)
        k = k.reshape(B, S, num_heads, Dh).transpose(0, 2, 1, 3)
        v = v.reshape(B, S, num_heads, Dh).transpose(0, 2, 1, 3)
        s = jnp.einsum("bhqd,bhkd->bhqk", q, k) / jnp.sqrt(jnp.float32(Dh))
        pmat = jax.nn.softmax(s, axis=-1)
        attn = jnp.einsum("bhqk,bhkd->bhqd", pmat, v).transpose(0, 2, 1, 3)
        attn = attn.reshape(B, S, E) @ p["wo"].T + p["bo"][0]
        h1 = _layernorm(x + attn, p["ln1w"][0], p["ln1b"][0])
        ff = jnp.maximum(h1 @ p["w1"].T + p["b1"][0], 0.0)
        ff = ff @ p["w2"].T + p["b2"][0]
        x = _layernorm(h1 + ff, p["ln2w"][0], p["ln2b"][0])
    return x @ fc["w"].T + fc["b"][0]


# ---------------------------------- main ---------------------------------------

if __name__ == "__main__":
    embed_dim, num_heads, num_layers, num_classes = 32, 4, 2, 5
    B, S = 2, 8

    key = jax.random.PRNGKey(0)
    key, kx, kp = jax.random.split(key, 3)
    x = jax.random.normal(kx, (B, S, embed_dim), jnp.float32)
    layer_params, fc_params = make_params(kp, embed_dim, num_heads,
                                          num_layers, num_classes)

    out = transformer_head_forward(x, layer_params, fc_params,
                                   num_heads, num_classes)
    out = jax.block_until_ready(out)

    ref = jax.block_until_ready(ref_forward(x, layer_params, fc_params, num_heads))
    assert out.shape == (B, S, num_classes)
    # atol covers the EUP approximate-reciprocal softmax denominator.
    np.testing.assert_allclose(np.asarray(out), np.asarray(ref),
                               rtol=1e-3, atol=2e-4)
    print("KERNEL_OK")
</pallas_src>

<mosaic_0001>
module attributes {stable_mosaic.version = 11 : i64} {
  func.func @fused_head_kernel(%arg0: memref<2x8x32xf32, #tpu.memory_space<vmem>>, %arg1: memref<2x4x32x32xf32, #tpu.memory_space<vmem>>, %arg2: memref<2x32x512xf32, #tpu.memory_space<vmem>>, %arg3: memref<2x512x32xf32, #tpu.memory_space<vmem>>, %arg4: memref<2x10x512xf32, #tpu.memory_space<vmem>>, %arg5: memref<32x128xf32, #tpu.memory_space<vmem>>, %arg6: memref<1x128xf32, #tpu.memory_space<vmem>>, %arg7: memref<2x8x128xf32, #tpu.memory_space<vmem>>) attributes {dimension_semantics = [], scalar_prefetch = 0 : i64, scratch_operands = 0 : i64, tpu.core_type = #tpu.core_type<tc>} {
    %c0 = arith.constant 0 : index
    %c0_0 = arith.constant 0 : index
    %c0_1 = arith.constant 0 : index
    %0 = vector.load %arg0[%c0, %c0_0, %c0_1] : memref<2x8x32xf32, #tpu.memory_space<vmem>>, vector<2x8x32xf32>
    %1 = vector.shape_cast %0 : vector<2x8x32xf32> to vector<16x32xf32>
    %c0_2 = arith.constant 0 : index
    %c0_3 = arith.constant 0 : index
    %c0_4 = arith.constant 0 : index
    %c0_5 = arith.constant 0 : index
    %2 = vector.load %arg1[%c0_2, %c0_3, %c0_4, %c0_5] : memref<2x4x32x32xf32, #tpu.memory_space<vmem>>, vector<1x4x32x32xf32>
    %3 = vector.shape_cast %2 : vector<1x4x32x32xf32> to vector<4x32x32xf32>
    %c0_6 = arith.constant 0 : index
    %c0_7 = arith.constant 0 : index
    %c0_8 = arith.constant 0 : index
    %4 = vector.load %arg4[%c0_6, %c0_7, %c0_8] : memref<2x10x512xf32, #tpu.memory_space<vmem>>, vector<1x10x512xf32>
    %5 = vector.shape_cast %4 : vector<1x10x512xf32> to vector<10x512xf32>
    %6 = vector.extract_strided_slice %5 {offsets = [0, 0], sizes = [1, 32], strides = [1, 1]} : vector<10x512xf32> to vector<1x32xf32>
    %7 = vector.extract_strided_slice %5 {offsets = [1, 0], sizes = [1, 32], strides = [1, 1]} : vector<10x512xf32> to vector<1x32xf32>
    %8 = vector.extract_strided_slice %5 {offsets = [2, 0], sizes = [1, 32], strides = [1, 1]} : vector<10x512xf32> to vector<1x32xf32>
    %9 = vector.extract_strided_slice %5 {offsets = [3, 0], sizes = [1, 32], strides = [1, 1]} : vector<10x512xf32> to vector<1x32xf32>
    %10 = vector.extract_strided_slice %5 {offsets = [4, 0], sizes = [1, 32], strides = [1, 1]} : vector<10x512xf32> to vector<1x32xf32>
    %11 = vector.extract_strided_slice %5 {offsets = [5, 0], sizes = [1, 32], strides = [1, 1]} : vector<10x512xf32> to vector<1x32xf32>
    %12 = vector.extract_strided_slice %5 {offsets = [6, 0], sizes = [1, 32], strides = [1, 1]} : vector<10x512xf32> to vector<1x32xf32>
    %13 = vector.extract_strided_slice %5 {offsets = [7, 0], sizes = [1, 32], strides = [1, 1]} : vector<10x512xf32> to vector<1x32xf32>
    %14 = vector.extract_strided_slice %5 {offsets = [8, 0], sizes = [1, 32], strides = [1, 1]} : vector<10x512xf32> to vector<1x32xf32>
    %15 = vector.extract_strided_slice %5 {offsets = [9, 0], sizes = [1, 512], strides = [1, 1]} : vector<10x512xf32> to vector<1x512xf32>
    %16 = vector.extract_strided_slice %3 {offsets = [0, 0, 0], sizes = [1, 32, 32], strides = [1, 1, 1]} : vector<4x32x32xf32> to vector<1x32x32xf32>
    %17 = vector.shape_cast %16 : vector<1x32x32xf32> to vector<32x32xf32>
    %cst = arith.constant dense<0.000000e+00> : vector<16x32xf32>
    %18 = tpu.matmul %1, %17, %cst {dimension_numbers = #tpu.dot_dimension_numbers<[1], [0], [0], [1], [0, 0, 1, 1], [], []>} : vector<16x32xf32>, vector<32x32xf32>, vector<16x32xf32> -> vector<16x32xf32>
    %19 = vector.broadcast %6 : vector<1x32xf32> to vector<16x32xf32>
    %20 = arith.addf %18, %19 : vector<16x32xf32>
    %21 = vector.extract_strided_slice %3 {offsets = [1, 0, 0], sizes = [1, 32, 32], strides = [1, 1, 1]} : vector<4x32x32xf32> to vector<1x32x32xf32>
    %22 = vector.shape_cast %21 : vector<1x32x32xf32> to vector<32x32xf32>
    %cst_9 = arith.constant dense<0.000000e+00> : vector<16x32xf32>
    %23 = tpu.matmul %1, %22, %cst_9 {dimension_numbers = #tpu.dot_dimension_numbers<[1], [0], [0], [1], [0, 0, 1, 1], [], []>} : vector<16x32xf32>, vector<32x32xf32>, vector<16x32xf32> -> vector<16x32xf32>
    %24 = vector.broadcast %7 : vector<1x32xf32> to vector<16x32xf32>
    %25 = arith.addf %23, %24 : vector<16x32xf32>
    %26 = vector.extract_strided_slice %3 {offsets = [2, 0, 0], sizes = [1, 32, 32], strides = [1, 1, 1]} : vector<4x32x32xf32> to vector<1x32x32xf32>
    %27 = vector.shape_cast %26 : vector<1x32x32xf32> to vector<32x32xf32>
    %cst_10 = arith.constant dense<0.000000e+00> : vector<16x32xf32>
    %28 = tpu.matmul %1, %27, %cst_10 {dimension_numbers = #tpu.dot_dimension_numbers<[1], [0], [0], [1], [0, 0, 1, 1], [], []>} : vector<16x32xf32>, vector<32x32xf32>, vector<16x32xf32> -> vector<16x32xf32>
    %29 = vector.broadcast %8 : vector<1x32xf32> to vector<16x32xf32>
    %30 = arith.addf %28, %29 : vector<16x32xf32>
    %31 = vector.shape_cast %20 : vector<16x32xf32> to vector<2x8x32xf32>
    %32 = vector.shape_cast %25 : vector<16x32xf32> to vector<2x8x32xf32>
    %33 = vector.shape_cast %30 : vector<16x32xf32> to vector<2x8x32xf32>
    %34 = vector.extract_strided_slice %31 {offsets = [0, 0, 0], sizes = [2, 8, 8], strides = [1, 1, 1]} : vector<2x8x32xf32> to vector<2x8x8xf32>
    %35 = vector.extract_strided_slice %31 {offsets = [0, 0, 8], sizes = [2, 8, 8], strides = [1, 1, 1]} : vector<2x8x32xf32> to vector<2x8x8xf32>
    %36 = vector.extract_strided_slice %31 {offsets = [0, 0, 16], sizes = [2, 8, 8], strides = [1, 1, 1]} : vector<2x8x32xf32> to vector<2x8x8xf32>
    %37 = vector.extract_strided_slice %31 {offsets = [0, 0, 24], sizes = [2, 8, 8], strides = [1, 1, 1]} : vector<2x8x32xf32> to vector<2x8x8xf32>
    %38 = vector.shape_cast %34 : vector<2x8x8xf32> to vector<1x2x8x8xf32>
    %39 = vector.shape_cast %35 : vector<2x8x8xf32> to vector<1x2x8x8xf32>
    %40 = vector.shape_cast %36 : vector<2x8x8xf32> to vector<1x2x8x8xf32>
    %41 = vector.shape_cast %37 : vector<2x8x8xf32> to vector<1x2x8x8xf32>
    %42 = tpu.concatenate %38, %39, %40, %41 in 0 : vector<1x2x8x8xf32>, vector<1x2x8x8xf32>, vector<1x2x8x8xf32>, vector<1x2x8x8xf32> -> vector<4x2x8x8xf32>
    %43 = vector.shape_cast %42 : vector<4x2x8x8xf32> to vector<8x8x8xf32>
    %44 = vector.extract_strided_slice %32 {offsets = [0, 0, 0], sizes = [2, 8, 8], strides = [1, 1, 1]} : vector<2x8x32xf32> to vector<2x8x8xf32>
    %45 = vector.extract_strided_slice %32 {offsets = [0, 0, 8], sizes = [2, 8, 8], strides = [1, 1, 1]} : vector<2x8x32xf32> to vector<2x8x8xf32>
    %46 = vector.extract_strided_slice %32 {offsets = [0, 0, 16], sizes = [2, 8, 8], strides = [1, 1, 1]} : vector<2x8x32xf32> to vector<2x8x8xf32>
    %47 = vector.extract_strided_slice %32 {offsets = [0, 0, 24], sizes = [2, 8, 8], strides = [1, 1, 1]} : vector<2x8x32xf32> to vector<2x8x8xf32>
    %48 = vector.shape_cast %44 : vector<2x8x8xf32> to vector<1x2x8x8xf32>
    %49 = vector.shape_cast %45 : vector<2x8x8xf32> to vector<1x2x8x8xf32>
    %50 = vector.shape_cast %46 : vector<2x8x8xf32> to vector<1x2x8x8xf32>
    %51 = vector.shape_cast %47 : vector<2x8x8xf32> to vector<1x2x8x8xf32>
    %52 = tpu.concatenate %48, %49, %50, %51 in 0 : vector<1x2x8x8xf32>, vector<1x2x8x8xf32>, vector<1x2x8x8xf32>, vector<1x2x8x8xf32> -> vector<4x2x8x8xf32>
    %53 = vector.shape_cast %52 : vector<4x2x8x8xf32> to vector<8x8x8xf32>
    %54 = vector.extract_strided_slice %33 {offsets = [0, 0, 0], sizes = [2, 8, 8], strides = [1, 1, 1]} : vector<2x8x32xf32> to vector<2x8x8xf32>
    %55 = vector.extract_strided_slice %33 {offsets = [0, 0, 8], sizes = [2, 8, 8], strides = [1, 1, 1]} : vector<2x8x32xf32> to vector<2x8x8xf32>
    %56 = vector.extract_strided_slice %33 {offsets = [0, 0, 16], sizes = [2, 8, 8], strides = [1, 1, 1]} : vector<2x8x32xf32> to vector<2x8x8xf32>
    %57 = vector.extract_strided_slice %33 {offsets = [0, 0, 24], sizes = [2, 8, 8], strides = [1, 1, 1]} : vector<2x8x32xf32> to vector<2x8x8xf32>
    %58 = vector.shape_cast %54 : vector<2x8x8xf32> to vector<1x2x8x8xf32>
    %59 = vector.shape_cast %55 : vector<2x8x8xf32> to vector<1x2x8x8xf32>
    %60 = vector.shape_cast %56 : vector<2x8x8xf32> to vector<1x2x8x8xf32>
    %61 = vector.shape_cast %57 : vector<2x8x8xf32> to vector<1x2x8x8xf32>
    %62 = tpu.concatenate %58, %59, %60, %61 in 0 : vector<1x2x8x8xf32>, vector<1x2x8x8xf32>, vector<1x2x8x8xf32>, vector<1x2x8x8xf32> -> vector<4x2x8x8xf32>
    %63 = vector.shape_cast %62 : vector<4x2x8x8xf32> to vector<8x8x8xf32>
    "tpu.trace_start"() <{level = 10 : i32, message = "bqd,bkd->bqk"}> : () -> ()
    %cst_11 = arith.constant dense<0.000000e+00> : vector<8x8x8xf32>
    %64 = tpu.matmul %43, %53, %cst_11 {dimension_numbers = #tpu.dot_dimension_numbers<[2], [2], [1], [1], [0, 0, 0, 1, 1, 1], [0], [0]>} : vector<8x8x8xf32>, vector<8x8x8xf32>, vector<8x8x8xf32> -> vector<8x8x8xf32>
    "tpu.trace_stop"() : () -> ()
    %cst_12 = arith.constant dense<0xFF800000> : vector<8x8xf32>
    %65 = vector.multi_reduction <maximumf>, %64, %cst_12 [2] : vector<8x8x8xf32> to vector<8x8xf32>
    %66 = vector.shape_cast %65 : vector<8x8xf32> to vector<8x8x1xf32>
    %67 = vector.broadcast %66 : vector<8x8x1xf32> to vector<8x8x8xf32>
    %68 = arith.subf %64, %67 : vector<8x8x8xf32>
    %69 = math.exp %68 : vector<8x8x8xf32>
    %cst_13 = arith.constant dense<0.000000e+00> : vector<8x8xf32>
    %70 = vector.multi_reduction <add>, %69, %cst_13 [2] : vector<8x8x8xf32> to vector<8x8xf32>
    %71 = vector.shape_cast %70 : vector<8x8xf32> to vector<8x8x1xf32>
    %72 = tpu.reciprocal %71 {approx = true} : vector<8x8x1xf32> -> vector<8x8x1xf32>
    %73 = vector.broadcast %72 : vector<8x8x1xf32> to vector<8x8x8xf32>
    %74 = arith.mulf %69, %73 : vector<8x8x8xf32>
    "tpu.trace_start"() <{level = 10 : i32, message = "bqk,bkd->bqd"}> : () -> ()
    %cst_14 = arith.constant dense<0.000000e+00> : vector<8x8x8xf32>
    %75 = tpu.matmul %74, %63, %cst_14 {dimension_numbers = #tpu.dot_dimension_numbers<[2], [1], [1], [2], [0, 0, 0, 1, 1, 2], [0], [0]>} : vector<8x8x8xf32>, vector<8x8x8xf32>, vector<8x8x8xf32> -> vector<8x8x8xf32>
    "tpu.trace_stop"() : () -> ()
    %76 = vector.shape_cast %75 : vector<8x8x8xf32> to vector<4x2x8x8xf32>
    %77 = vector.extract_strided_slice %76 {offsets = [0, 0, 0, 0], sizes = [1, 2, 8, 8], strides = [1, 1, 1, 1]} : vector<4x2x8x8xf32> to vector<1x2x8x8xf32>
    %78 = vector.shape_cast %77 : vector<1x2x8x8xf32> to vector<2x8x8xf32>
    %79 = vector.extract_strided_slice %76 {offsets = [1, 0, 0, 0], sizes = [1, 2, 8, 8], strides = [1, 1, 1, 1]} : vector<4x2x8x8xf32> to vector<1x2x8x8xf32>
    %80 = vector.shape_cast %79 : vector<1x2x8x8xf32> to vector<2x8x8xf32>
    %81 = vector.extract_strided_slice %76 {offsets = [2, 0, 0, 0], sizes = [1, 2, 8, 8], strides = [1, 1, 1, 1]} : vector<4x2x8x8xf32> to vector<1x2x8x8xf32>
    %82 = vector.shape_cast %81 : vector<1x2x8x8xf32> to vector<2x8x8xf32>
    %83 = vector.extract_strided_slice %76 {offsets = [3, 0, 0, 0], sizes = [1, 2, 8, 8], strides = [1, 1, 1, 1]} : vector<4x2x8x8xf32> to vector<1x2x8x8xf32>
    %84 = vector.shape_cast %83 : vector<1x2x8x8xf32> to vector<2x8x8xf32>
    %85 = tpu.concatenate %78, %80, %82, %84 in 2 : vector<2x8x8xf32>, vector<2x8x8xf32>, vector<2x8x8xf32>, vector<2x8x8xf32> -> vector<2x8x32xf32>
    %86 = vector.shape_cast %85 : vector<2x8x32xf32> to vector<16x32xf32>
    %87 = vector.extract_strided_slice %3 {offsets = [3, 0, 0], sizes = [1, 32, 32], strides = [1, 1, 1]} : vector<4x32x32xf32> to vector<1x32x32xf32>
    %88 = vector.shape_cast %87 : vector<1x32x32xf32> to vector<32x32xf32>
    %cst_15 = arith.constant dense<0.000000e+00> : vector<16x32xf32>
    %89 = tpu.matmul %86, %88, %cst_15 {dimension_numbers = #tpu.dot_dimension_numbers<[1], [0], [0], [1], [0, 0, 1, 1], [], []>} : vector<16x32xf32>, vector<32x32xf32>, vector<16x32xf32> -> vector<16x32xf32>
    %90 = vector.broadcast %9 : vector<1x32xf32> to vector<16x32xf32>
    %91 = arith.addf %89, %90 : vector<16x32xf32>
    %92 = arith.addf %1, %91 : vector<16x32xf32>
    %cst_16 = arith.constant dense<0.000000e+00> : vector<16xf32>
    %93 = vector.multi_reduction <add>, %92, %cst_16 [1] : vector<16x32xf32> to vector<16xf32>
    %94 = vector.shape_cast %93 : vector<16xf32> to vector<16x1xf32>
    %cst_17 = arith.constant 3.200000e+01 : f32
    %95 = vector.broadcast %cst_17 : f32 to vector<16x1xf32>
    %96 = arith.divf %94, %95 : vector<16x1xf32>
    %97 = vector.broadcast %96 : vector<16x1xf32> to vector<16x32xf32>
    %98 = arith.subf %92, %97 : vector<16x32xf32>
    %99 = arith.mulf %98, %98 : vector<16x32xf32>
    %cst_18 = arith.constant dense<0.000000e+00> : vector<16xf32>
    %100 = vector.multi_reduction <add>, %99, %cst_18 [1] : vector<16x32xf32> to vector<16xf32>
    %101 = vector.shape_cast %100 : vector<16xf32> to vector<16x1xf32>
    %cst_19 = arith.constant 3.200000e+01 : f32
    %102 = vector.broadcast %cst_19 : f32 to vector<16x1xf32>
    %103 = arith.divf %101, %102 : vector<16x1xf32>
    %104 = vector.broadcast %96 : vector<16x1xf32> to vector<16x32xf32>
    %105 = arith.subf %92, %104 : vector<16x32xf32>
    %cst_20 = arith.constant 9.99999974E-6 : f32
    %106 = vector.broadcast %cst_20 : f32 to vector<16x1xf32>
    %107 = arith.addf %103, %106 : vector<16x1xf32>
    %108 = math.rsqrt %107 : vector<16x1xf32>
    %109 = vector.broadcast %108 : vector<16x1xf32> to vector<16x32xf32>
    %110 = arith.mulf %105, %109 : vector<16x32xf32>
    %111 = vector.broadcast %10 : vector<1x32xf32> to vector<16x32xf32>
    %112 = arith.mulf %110, %111 : vector<16x32xf32>
    %113 = vector.broadcast %11 : vector<1x32xf32> to vector<16x32xf32>
    %114 = arith.addf %112, %113 : vector<16x32xf32>
    %c0_21 = arith.constant 0 : index
    %c0_22 = arith.constant 0 : index
    %c0_23 = arith.constant 0 : index
    %115 = vector.load %arg2[%c0_21, %c0_22, %c0_23] : memref<2x32x512xf32, #tpu.memory_space<vmem>>, vector<1x32x512xf32>
    %116 = vector.shape_cast %115 : vector<1x32x512xf32> to vector<32x512xf32>
    %cst_24 = arith.constant dense<0.000000e+00> : vector<16x512xf32>
    %117 = tpu.matmul %114, %116, %cst_24 {dimension_numbers = #tpu.dot_dimension_numbers<[1], [0], [0], [1], [0, 0, 1, 1], [], []>} : vector<16x32xf32>, vector<32x512xf32>, vector<16x512xf32> -> vector<16x512xf32>
    %118 = vector.broadcast %15 : vector<1x512xf32> to vector<16x512xf32>
    %119 = arith.addf %117, %118 : vector<16x512xf32>
    %cst_25 = arith.constant 0.000000e+00 : f32
    %120 = vector.broadcast %cst_25 : f32 to vector<16x512xf32>
    %121 = arith.maximumf %119, %120 : vector<16x512xf32>
    %c0_26 = arith.constant 0 : index
    %c0_27 = arith.constant 0 : index
    %c0_28 = arith.constant 0 : index
    %122 = vector.load %arg3[%c0_26, %c0_27, %c0_28] : memref<2x512x32xf32, #tpu.memory_space<vmem>>, vector<1x512x32xf32>
    %123 = vector.shape_cast %122 : vector<1x512x32xf32> to vector<512x32xf32>
    %cst_29 = arith.constant dense<0.000000e+00> : vector<16x32xf32>
    %124 = tpu.matmul %121, %123, %cst_29 {dimension_numbers = #tpu.dot_dimension_numbers<[1], [0], [0], [1], [0, 0, 1, 1], [], []>} : vector<16x512xf32>, vector<512x32xf32>, vector<16x32xf32> -> vector<16x32xf32>
    %125 = vector.broadcast %14 : vector<1x32xf32> to vector<16x32xf32>
    %126 = arith.addf %124, %125 : vector<16x32xf32>
    %127 = arith.addf %114, %126 : vector<16x32xf32>
    %cst_30 = arith.constant dense<0.000000e+00> : vector<16xf32>
    %128 = vector.multi_reduction <add>, %127, %cst_30 [1] : vector<16x32xf32> to vector<16xf32>
    %129 = vector.shape_cast %128 : vector<16xf32> to vector<16x1xf32>
    %cst_31 = arith.constant 3.200000e+01 : f32
    %130 = vector.broadcast %cst_31 : f32 to vector<16x1xf32>
    %131 = arith.divf %129, %130 : vector<16x1xf32>
    %132 = vector.broadcast %131 : vector<16x1xf32> to vector<16x32xf32>
    %133 = arith.subf %127, %132 : vector<16x32xf32>
    %134 = arith.mulf %133, %133 : vector<16x32xf32>
    %cst_32 = arith.constant dense<0.000000e+00> : vector<16xf32>
    %135 = vector.multi_reduction <add>, %134, %cst_32 [1] : vector<16x32xf32> to vector<16xf32>
    %136 = vector.shape_cast %135 : vector<16xf32> to vector<16x1xf32>
    %cst_33 = arith.constant 3.200000e+01 : f32
    %137 = vector.broadcast %cst_33 : f32 to vector<16x1xf32>
    %138 = arith.divf %136, %137 : vector<16x1xf32>
    %139 = vector.broadcast %131 : vector<16x1xf32> to vector<16x32xf32>
    %140 = arith.subf %127, %139 : vector<16x32xf32>
    %cst_34 = arith.constant 9.99999974E-6 : f32
    %141 = vector.broadcast %cst_34 : f32 to vector<16x1xf32>
    %142 = arith.addf %138, %141 : vector<16x1xf32>
    %143 = math.rsqrt %142 : vector<16x1xf32>
    %144 = vector.broadcast %143 : vector<16x1xf32> to vector<16x32xf32>
    %145 = arith.mulf %140, %144 : vector<16x32xf32>
    %146 = vector.broadcast %12 : vector<1x32xf32> to vector<16x32xf32>
    %147 = arith.mulf %145, %146 : vector<16x32xf32>
    %148 = vector.broadcast %13 : vector<1x32xf32> to vector<16x32xf32>
    %149 = arith.addf %147, %148 : vector<16x32xf32>
    %c1 = arith.constant 1 : index
    %c0_35 = arith.constant 0 : index
    %c0_36 = arith.constant 0 : index
    %c0_37 = arith.constant 0 : index
    %150 = vector.load %arg1[%c1, %c0_35, %c0_36, %c0_37] : memref<2x4x32x32xf32, #tpu.memory_space<vmem>>, vector<1x4x32x32xf32>
    %151 = vector.shape_cast %150 : vector<1x4x32x32xf32> to vector<4x32x32xf32>
    %c1_38 = arith.constant 1 : index
    %c0_39 = arith.constant 0 : index
    %c0_40 = arith.constant 0 : index
    %152 = vector.load %arg4[%c1_38, %c0_39, %c0_40] : memref<2x10x512xf32, #tpu.memory_space<vmem>>, vector<1x10x512xf32>
    %153 = vector.shape_cast %152 : vector<1x10x512xf32> to vector<10x512xf32>
    %154 = vector.extract_strided_slice %153 {offsets = [0, 0], sizes = [1, 32], strides = [1, 1]} : vector<10x512xf32> to vector<1x32xf32>
    %155 = vector.extract_strided_slice %153 {offsets = [1, 0], sizes = [1, 32], strides = [1, 1]} : vector<10x512xf32> to vector<1x32xf32>
    %156 = vector.extract_strided_slice %153 {offsets = [2, 0], sizes = [1, 32], strides = [1, 1]} : vector<10x512xf32> to vector<1x32xf32>
    %157 = vector.extract_strided_slice %153 {offsets = [3, 0], sizes = [1, 32], strides = [1, 1]} : vector<10x512xf32> to vector<1x32xf32>
    %158 = vector.extract_strided_slice %153 {offsets = [4, 0], sizes = [1, 32], strides = [1, 1]} : vector<10x512xf32> to vector<1x32xf32>
    %159 = vector.extract_strided_slice %153 {offsets = [5, 0], sizes = [1, 32], strides = [1, 1]} : vector<10x512xf32> to vector<1x32xf32>
    %160 = vector.extract_strided_slice %153 {offsets = [6, 0], sizes = [1, 32], strides = [1, 1]} : vector<10x512xf32> to vector<1x32xf32>
    %161 = vector.extract_strided_slice %153 {offsets = [7, 0], sizes = [1, 32], strides = [1, 1]} : vector<10x512xf32> to vector<1x32xf32>
    %162 = vector.extract_strided_slice %153 {offsets = [8, 0], sizes = [1, 32], strides = [1, 1]} : vector<10x512xf32> to vector<1x32xf32>
    %163 = vector.extract_strided_slice %153 {offsets = [9, 0], sizes = [1, 512], strides = [1, 1]} : vector<10x512xf32> to vector<1x512xf32>
    %164 = vector.extract_strided_slice %151 {offsets = [0, 0, 0], sizes = [1, 32, 32], strides = [1, 1, 1]} : vector<4x32x32xf32> to vector<1x32x32xf32>
    %165 = vector.shape_cast %164 : vector<1x32x32xf32> to vector<32x32xf32>
    %cst_41 = arith.constant dense<0.000000e+00> : vector<16x32xf32>
    %166 = tpu.matmul %149, %165, %cst_41 {dimension_numbers = #tpu.dot_dimension_numbers<[1], [0], [0], [1], [0, 0, 1, 1], [], []>} : vector<16x32xf32>, vector<32x32xf32>, vector<16x32xf32> -> vector<16x32xf32>
    %167 = vector.broadcast %154 : vector<1x32xf32> to vector<16x32xf32>
    %168 = arith.addf %166, %167 : vector<16x32xf32>
    %169 = vector.extract_strided_slice %151 {offsets = [1, 0, 0], sizes = [1, 32, 32], strides = [1, 1, 1]} : vector<4x32x32xf32> to vector<1x32x32xf32>
    %170 = vector.shape_cast %169 : vector<1x32x32xf32> to vector<32x32xf32>
    %cst_42 = arith.constant dense<0.000000e+00> : vector<16x32xf32>
    %171 = tpu.matmul %149, %170, %cst_42 {dimension_numbers = #tpu.dot_dimension_numbers<[1], [0], [0], [1], [0, 0, 1, 1], [], []>} : vector<16x32xf32>, vector<32x32xf32>, vector<16x32xf32> -> vector<16x32xf32>
    %172 = vector.broadcast %155 : vector<1x32xf32> to vector<16x32xf32>
    %173 = arith.addf %171, %172 : vector<16x32xf32>
    %174 = vector.extract_strided_slice %151 {offsets = [2, 0, 0], sizes = [1, 32, 32], strides = [1, 1, 1]} : vector<4x32x32xf32> to vector<1x32x32xf32>
    %175 = vector.shape_cast %174 : vector<1x32x32xf32> to vector<32x32xf32>
    %cst_43 = arith.constant dense<0.000000e+00> : vector<16x32xf32>
    %176 = tpu.matmul %149, %175, %cst_43 {dimension_numbers = #tpu.dot_dimension_numbers<[1], [0], [0], [1], [0, 0, 1, 1], [], []>} : vector<16x32xf32>, vector<32x32xf32>, vector<16x32xf32> -> vector<16x32xf32>
    %177 = vector.broadcast %156 : vector<1x32xf32> to vector<16x32xf32>
    %178 = arith.addf %176, %177 : vector<16x32xf32>
    %179 = vector.shape_cast %168 : vector<16x32xf32> to vector<2x8x32xf32>
    %180 = vector.shape_cast %173 : vector<16x32xf32> to vector<2x8x32xf32>
    %181 = vector.shape_cast %178 : vector<16x32xf32> to vector<2x8x32xf32>
    %182 = vector.extract_strided_slice %179 {offsets = [0, 0, 0], sizes = [2, 8, 8], strides = [1, 1, 1]} : vector<2x8x32xf32> to vector<2x8x8xf32>
    %183 = vector.extract_strided_slice %179 {offsets = [0, 0, 8], sizes = [2, 8, 8], strides = [1, 1, 1]} : vector<2x8x32xf32> to vector<2x8x8xf32>
    %184 = vector.extract_strided_slice %179 {offsets = [0, 0, 16], sizes = [2, 8, 8], strides = [1, 1, 1]} : vector<2x8x32xf32> to vector<2x8x8xf32>
    %185 = vector.extract_strided_slice %179 {offsets = [0, 0, 24], sizes = [2, 8, 8], strides = [1, 1, 1]} : vector<2x8x32xf32> to vector<2x8x8xf32>
    %186 = vector.shape_cast %182 : vector<2x8x8xf32> to vector<1x2x8x8xf32>
    %187 = vector.shape_cast %183 : vector<2x8x8xf32> to vector<1x2x8x8xf32>
    %188 = vector.shape_cast %184 : vector<2x8x8xf32> to vector<1x2x8x8xf32>
    %189 = vector.shape_cast %185 : vector<2x8x8xf32> to vector<1x2x8x8xf32>
    %190 = tpu.concatenate %186, %187, %188, %189 in 0 : vector<1x2x8x8xf32>, vector<1x2x8x8xf32>, vector<1x2x8x8xf32>, vector<1x2x8x8xf32> -> vector<4x2x8x8xf32>
    %191 = vector.shape_cast %190 : vector<4x2x8x8xf32> to vector<8x8x8xf32>
    %192 = vector.extract_strided_slice %180 {offsets = [0, 0, 0], sizes = [2, 8, 8], strides = [1, 1, 1]} : vector<2x8x32xf32> to vector<2x8x8xf32>
    %193 = vector.extract_strided_slice %180 {offsets = [0, 0, 8], sizes = [2, 8, 8], strides = [1, 1, 1]} : vector<2x8x32xf32> to vector<2x8x8xf32>
    %194 = vector.extract_strided_slice %180 {offsets = [0, 0, 16], sizes = [2, 8, 8], strides = [1, 1, 1]} : vector<2x8x32xf32> to vector<2x8x8xf32>
    %195 = vector.extract_strided_slice %180 {offsets = [0, 0, 24], sizes = [2, 8, 8], strides = [1, 1, 1]} : vector<2x8x32xf32> to vector<2x8x8xf32>
    %196 = vector.shape_cast %192 : vector<2x8x8xf32> to vector<1x2x8x8xf32>
    %197 = vector.shape_cast %193 : vector<2x8x8xf32> to vector<1x2x8x8xf32>
    %198 = vector.shape_cast %194 : vector<2x8x8xf32> to vector<1x2x8x8xf32>
    %199 = vector.shape_cast %195 : vector<2x8x8xf32> to vector<1x2x8x8xf32>
    %200 = tpu.concatenate %196, %197, %198, %199 in 0 : vector<1x2x8x8xf32>, vector<1x2x8x8xf32>, vector<1x2x8x8xf32>, vector<1x2x8x8xf32> -> vector<4x2x8x8xf32>
    %201 = vector.shape_cast %200 : vector<4x2x8x8xf32> to vector<8x8x8xf32>
    %202 = vector.extract_strided_slice %181 {offsets = [0, 0, 0], sizes = [2, 8, 8], strides = [1, 1, 1]} : vector<2x8x32xf32> to vector<2x8x8xf32>
    %203 = vector.extract_strided_slice %181 {offsets = [0, 0, 8], sizes = [2, 8, 8], strides = [1, 1, 1]} : vector<2x8x32xf32> to vector<2x8x8xf32>
    %204 = vector.extract_strided_slice %181 {offsets = [0, 0, 16], sizes = [2, 8, 8], strides = [1, 1, 1]} : vector<2x8x32xf32> to vector<2x8x8xf32>
    %205 = vector.extract_strided_slice %181 {offsets = [0, 0, 24], sizes = [2, 8, 8], strides = [1, 1, 1]} : vector<2x8x32xf32> to vector<2x8x8xf32>
    %206 = vector.shape_cast %202 : vector<2x8x8xf32> to vector<1x2x8x8xf32>
    %207 = vector.shape_cast %203 : vector<2x8x8xf32> to vector<1x2x8x8xf32>
    %208 = vector.shape_cast %204 : vector<2x8x8xf32> to vector<1x2x8x8xf32>
    %209 = vector.shape_cast %205 : vector<2x8x8xf32> to vector<1x2x8x8xf32>
    %210 = tpu.concatenate %206, %207, %208, %209 in 0 : vector<1x2x8x8xf32>, vector<1x2x8x8xf32>, vector<1x2x8x8xf32>, vector<1x2x8x8xf32> -> vector<4x2x8x8xf32>
    %211 = vector.shape_cast %210 : vector<4x2x8x8xf32> to vector<8x8x8xf32>
    "tpu.trace_start"() <{level = 10 : i32, message = "bqd,bkd->bqk"}> : () -> ()
    %cst_44 = arith.constant dense<0.000000e+00> : vector<8x8x8xf32>
    %212 = tpu.matmul %191, %201, %cst_44 {dimension_numbers = #tpu.dot_dimension_numbers<[2], [2], [1], [1], [0, 0, 0, 1, 1, 1], [0], [0]>} : vector<8x8x8xf32>, vector<8x8x8xf32>, vector<8x8x8xf32> -> vector<8x8x8xf32>
    "tpu.trace_stop"() : () -> ()
    %cst_45 = arith.constant dense<0xFF800000> : vector<8x8xf32>
    %213 = vector.multi_reduction <maximumf>, %212, %cst_45 [2] : vector<8x8x8xf32> to vector<8x8xf32>
    %214 = vector.shape_cast %213 : vector<8x8xf32> to vector<8x8x1xf32>
    %215 = vector.broadcast %214 : vector<8x8x1xf32> to vector<8x8x8xf32>
    %216 = arith.subf %212, %215 : vector<8x8x8xf32>
    %217 = math.exp %216 : vector<8x8x8xf32>
    %cst_46 = arith.constant dense<0.000000e+00> : vector<8x8xf32>
    %218 = vector.multi_reduction <add>, %217, %cst_46 [2] : vector<8x8x8xf32> to vector<8x8xf32>
    %219 = vector.shape_cast %218 : vector<8x8xf32> to vector<8x8x1xf32>
    %220 = tpu.reciprocal %219 {approx = true} : vector<8x8x1xf32> -> vector<8x8x1xf32>
    %221 = vector.broadcast %220 : vector<8x8x1xf32> to vector<8x8x8xf32>
    %222 = arith.mulf %217, %221 : vector<8x8x8xf32>
    "tpu.trace_start"() <{level = 10 : i32, message = "bqk,bkd->bqd"}> : () -> ()
    %cst_47 = arith.constant dense<0.000000e+00> : vector<8x8x8xf32>
    %223 = tpu.matmul %222, %211, %cst_47 {dimension_numbers = #tpu.dot_dimension_numbers<[2], [1], [1], [2], [0, 0, 0, 1, 1, 2], [0], [0]>} : vector<8x8x8xf32>, vector<8x8x8xf32>, vector<8x8x8xf32> -> vector<8x8x8xf32>
    "tpu.trace_stop"() : () -> ()
    %224 = vector.shape_cast %223 : vector<8x8x8xf32> to vector<4x2x8x8xf32>
    %225 = vector.extract_strided_slice %224 {offsets = [0, 0, 0, 0], sizes = [1, 2, 8, 8], strides = [1, 1, 1, 1]} : vector<4x2x8x8xf32> to vector<1x2x8x8xf32>
    %226 = vector.shape_cast %225 : vector<1x2x8x8xf32> to vector<2x8x8xf32>
    %227 = vector.extract_strided_slice %224 {offsets = [1, 0, 0, 0], sizes = [1, 2, 8, 8], strides = [1, 1, 1, 1]} : vector<4x2x8x8xf32> to vector<1x2x8x8xf32>
    %228 = vector.shape_cast %227 : vector<1x2x8x8xf32> to vector<2x8x8xf32>
    %229 = vector.extract_strided_slice %224 {offsets = [2, 0, 0, 0], sizes = [1, 2, 8, 8], strides = [1, 1, 1, 1]} : vector<4x2x8x8xf32> to vector<1x2x8x8xf32>
    %230 = vector.shape_cast %229 : vector<1x2x8x8xf32> to vector<2x8x8xf32>
    %231 = vector.extract_strided_slice %224 {offsets = [3, 0, 0, 0], sizes = [1, 2, 8, 8], strides = [1, 1, 1, 1]} : vector<4x2x8x8xf32> to vector<1x2x8x8xf32>
    %232 = vector.shape_cast %231 : vector<1x2x8x8xf32> to vector<2x8x8xf32>
    %233 = tpu.concatenate %226, %228, %230, %232 in 2 : vector<2x8x8xf32>, vector<2x8x8xf32>, vector<2x8x8xf32>, vector<2x8x8xf32> -> vector<2x8x32xf32>
    %234 = vector.shape_cast %233 : vector<2x8x32xf32> to vector<16x32xf32>
    %235 = vector.extract_strided_slice %151 {offsets = [3, 0, 0], sizes = [1, 32, 32], strides = [1, 1, 1]} : vector<4x32x32xf32> to vector<1x32x32xf32>
    %236 = vector.shape_cast %235 : vector<1x32x32xf32> to vector<32x32xf32>
    %cst_48 = arith.constant dense<0.000000e+00> : vector<16x32xf32>
    %237 = tpu.matmul %234, %236, %cst_48 {dimension_numbers = #tpu.dot_dimension_numbers<[1], [0], [0], [1], [0, 0, 1, 1], [], []>} : vector<16x32xf32>, vector<32x32xf32>, vector<16x32xf32> -> vector<16x32xf32>
    %238 = vector.broadcast %157 : vector<1x32xf32> to vector<16x32xf32>
    %239 = arith.addf %237, %238 : vector<16x32xf32>
    %240 = arith.addf %149, %239 : vector<16x32xf32>
    %cst_49 = arith.constant dense<0.000000e+00> : vector<16xf32>
    %241 = vector.multi_reduction <add>, %240, %cst_49 [1] : vector<16x32xf32> to vector<16xf32>
    %242 = vector.shape_cast %241 : vector<16xf32> to vector<16x1xf32>
    %cst_50 = arith.constant 3.200000e+01 : f32
    %243 = vector.broadcast %cst_50 : f32 to vector<16x1xf32>
    %244 = arith.divf %242, %243 : vector<16x1xf32>
    %245 = vector.broadcast %244 : vector<16x1xf32> to vector<16x32xf32>
    %246 = arith.subf %240, %245 : vector<16x32xf32>
    %247 = arith.mulf %246, %246 : vector<16x32xf32>
    %cst_51 = arith.constant dense<0.000000e+00> : vector<16xf32>
    %248 = vector.multi_reduction <add>, %247, %cst_51 [1] : vector<16x32xf32> to vector<16xf32>
    %249 = vector.shape_cast %248 : vector<16xf32> to vector<16x1xf32>
    %cst_52 = arith.constant 3.200000e+01 : f32
    %250 = vector.broadcast %cst_52 : f32 to vector<16x1xf32>
    %251 = arith.divf %249, %250 : vector<16x1xf32>
    %252 = vector.broadcast %244 : vector<16x1xf32> to vector<16x32xf32>
    %253 = arith.subf %240, %252 : vector<16x32xf32>
    %cst_53 = arith.constant 9.99999974E-6 : f32
    %254 = vector.broadcast %cst_53 : f32 to vector<16x1xf32>
    %255 = arith.addf %251, %254 : vector<16x1xf32>
    %256 = math.rsqrt %255 : vector<16x1xf32>
    %257 = vector.broadcast %256 : vector<16x1xf32> to vector<16x32xf32>
    %258 = arith.mulf %253, %257 : vector<16x32xf32>
    %259 = vector.broadcast %158 : vector<1x32xf32> to vector<16x32xf32>
    %260 = arith.mulf %258, %259 : vector<16x32xf32>
    %261 = vector.broadcast %159 : vector<1x32xf32> to vector<16x32xf32>
    %262 = arith.addf %260, %261 : vector<16x32xf32>
    %c1_54 = arith.constant 1 : index
    %c0_55 = arith.constant 0 : index
    %c0_56 = arith.constant 0 : index
    %263 = vector.load %arg2[%c1_54, %c0_55, %c0_56] : memref<2x32x512xf32, #tpu.memory_space<vmem>>, vector<1x32x512xf32>
    %264 = vector.shape_cast %263 : vector<1x32x512xf32> to vector<32x512xf32>
    %cst_57 = arith.constant dense<0.000000e+00> : vector<16x512xf32>
    %265 = tpu.matmul %262, %264, %cst_57 {dimension_numbers = #tpu.dot_dimension_numbers<[1], [0], [0], [1], [0, 0, 1, 1], [], []>} : vector<16x32xf32>, vector<32x512xf32>, vector<16x512xf32> -> vector<16x512xf32>
    %266 = vector.broadcast %163 : vector<1x512xf32> to vector<16x512xf32>
    %267 = arith.addf %265, %266 : vector<16x512xf32>
    %cst_58 = arith.constant 0.000000e+00 : f32
    %268 = vector.broadcast %cst_58 : f32 to vector<16x512xf32>
    %269 = arith.maximumf %267, %268 : vector<16x512xf32>
    %c1_59 = arith.constant 1 : index
    %c0_60 = arith.constant 0 : index
    %c0_61 = arith.constant 0 : index
    %270 = vector.load %arg3[%c1_59, %c0_60, %c0_61] : memref<2x512x32xf32, #tpu.memory_space<vmem>>, vector<1x512x32xf32>
    %271 = vector.shape_cast %270 : vector<1x512x32xf32> to vector<512x32xf32>
    %cst_62 = arith.constant dense<0.000000e+00> : vector<16x32xf32>
    %272 = tpu.matmul %269, %271, %cst_62 {dimension_numbers = #tpu.dot_dimension_numbers<[1], [0], [0], [1], [0, 0, 1, 1], [], []>} : vector<16x512xf32>, vector<512x32xf32>, vector<16x32xf32> -> vector<16x32xf32>
    %273 = vector.broadcast %162 : vector<1x32xf32> to vector<16x32xf32>
    %274 = arith.addf %272, %273 : vector<16x32xf32>
    %275 = arith.addf %262, %274 : vector<16x32xf32>
    %cst_63 = arith.constant dense<0.000000e+00> : vector<16xf32>
    %276 = vector.multi_reduction <add>, %275, %cst_63 [1] : vector<16x32xf32> to vector<16xf32>
    %277 = vector.shape_cast %276 : vector<16xf32> to vector<16x1xf32>
    %cst_64 = arith.constant 3.200000e+01 : f32
    %278 = vector.broadcast %cst_64 : f32 to vector<16x1xf32>
    %279 = arith.divf %277, %278 : vector<16x1xf32>
    %280 = vector.broadcast %279 : vector<16x1xf32> to vector<16x32xf32>
    %281 = arith.subf %275, %280 : vector<16x32xf32>
    %282 = arith.mulf %281, %281 : vector<16x32xf32>
    %cst_65 = arith.constant dense<0.000000e+00> : vector<16xf32>
    %283 = vector.multi_reduction <add>, %282, %cst_65 [1] : vector<16x32xf32> to vector<16xf32>
    %284 = vector.shape_cast %283 : vector<16xf32> to vector<16x1xf32>
    %cst_66 = arith.constant 3.200000e+01 : f32
    %285 = vector.broadcast %cst_66 : f32 to vector<16x1xf32>
    %286 = arith.divf %284, %285 : vector<16x1xf32>
    %287 = vector.broadcast %279 : vector<16x1xf32> to vector<16x32xf32>
    %288 = arith.subf %275, %287 : vector<16x32xf32>
    %cst_67 = arith.constant 9.99999974E-6 : f32
    %289 = vector.broadcast %cst_67 : f32 to vector<16x1xf32>
    %290 = arith.addf %286, %289 : vector<16x1xf32>
    %291 = math.rsqrt %290 : vector<16x1xf32>
    %292 = vector.broadcast %291 : vector<16x1xf32> to vector<16x32xf32>
    %293 = arith.mulf %288, %292 : vector<16x32xf32>
    %294 = vector.broadcast %160 : vector<1x32xf32> to vector<16x32xf32>
    %295 = arith.mulf %293, %294 : vector<16x32xf32>
    %296 = vector.broadcast %161 : vector<1x32xf32> to vector<16x32xf32>
    %297 = arith.addf %295, %296 : vector<16x32xf32>
    %c0_68 = arith.constant 0 : index
    %c0_69 = arith.constant 0 : index
    %298 = vector.load %arg5[%c0_68, %c0_69] : memref<32x128xf32, #tpu.memory_space<vmem>>, vector<32x128xf32>
    %cst_70 = arith.constant dense<0.000000e+00> : vector<16x128xf32>
    %299 = tpu.matmul %297, %298, %cst_70 {dimension_numbers = #tpu.dot_dimension_numbers<[1], [0], [0], [1], [0, 0, 1, 1], [], []>} : vector<16x32xf32>, vector<32x128xf32>, vector<16x128xf32> -> vector<16x128xf32>
    %c0_71 = arith.constant 0 : index
    %c0_72 = arith.constant 0 : index
    %300 = vector.load %arg6[%c0_71, %c0_72] : memref<1x128xf32, #tpu.memory_space<vmem>>, vector<1x128xf32>
    %301 = vector.broadcast %300 : vector<1x128xf32> to vector<16x128xf32>
    %302 = arith.addf %299, %301 : vector<16x128xf32>
    %303 = vector.shape_cast %302 : vector<16x128xf32> to vector<2x8x128xf32>
    %c0_73 = arith.constant 0 : index
    %c0_74 = arith.constant 0 : index
    %c0_75 = arith.constant 0 : index
    %304 = vector.load %arg7[%c0_73, %c0_74, %c0_75] : memref<2x8x128xf32, #tpu.memory_space<vmem>>, vector<2x8x128xf32>
    tpu.vector_store %arg7[%c0_73, %c0_74, %c0_75], %303 {strides = array<i32>} : memref<2x8x128xf32, #tpu.memory_space<vmem>>, vector<2x8x128xf32>,
    return
  }
}

</mosaic_0001>

<llo_original>
// kernel: tpu_custom_call.1
$region0: #{tpu_custom_call.1}
  #allocation0 [shape = 'u32[]', space=smem, size = 0x4, offset = 0x4, fixed_abs, tag = 'smem constant byte address 0x4 - core index']
  #allocation1 [shape = 'u32[72,128]{1,0:T(1,128)}', space=vmem, size = 0x9000, scoped, tag = 'internal scratch']
  %s0 = inlined_call_operand.vmem [shape: f32[2,8,32], index: 0, kind: input, shape index: {}]
  %s1 = inlined_call_operand.vmem [shape: f32[2,4,32,32], index: 1, kind: input, shape index: {}]
  %s2 = inlined_call_operand.vmem [shape: f32[2,32,512], index: 2, kind: input, shape index: {}]
  %s3 = inlined_call_operand.vmem [shape: f32[2,512,32], index: 3, kind: input, shape index: {}]
  %s4 = inlined_call_operand.vmem [shape: f32[2,10,512], index: 4, kind: input, shape index: {}]
  %s5 = inlined_call_operand.vmem [shape: f32[32,128], index: 5, kind: input, shape index: {}]
  %s6 = inlined_call_operand.vmem [shape: f32[1,128], index: 6, kind: input, shape index: {}]
  %s7 = inlined_call_operand.hbm [shape: f32[2,8,128], index: 7, kind: output, shape index: {}]
  %s8 = sld [smem:[#allocation0]]
  $region38: #{tpu_custom_call.1} parent=0
    _
  %s10 = ssub.s32 1, %s8
  %s11 = scalar_select 0, %s10, %s8
  $region1: #{tpu_custom_call.1} parent=0
    #allocation2 [shape = 'u8[8192]{0}', space=vmem, size = 0x2000, scoped, tag = 'output window, operand 0, single buffered']
    #allocation3 [shape = 's32[1]{0}', space=sflag, size = 0x4, scoped, tag = 'scoped memory for tpu_custom_call.1']
    %12 = vsyncpa [#allocation3], 0
    // Predicated region
    $region2: #{tpu_custom_call.1} parent=1 // pred_check
      _
    $region3: #{tpu_custom_call.1} parent=1 // pred_check_branch
      %14 = sbr.rel (0) target = $region5
    $region4: #{tpu_custom_call.1} parent=1 // pred_region
      _
    $region5: #{tpu_custom_call.1} parent=1 // pred_fallthru
      _
    // Predicated region
    $region6: #{tpu_custom_call.1} parent=1 // pred_check
      _
    $region7: #{tpu_custom_call.1} parent=1 // pred_check_branch
      %16 = sbr.rel (0) target = $region9
    $region8: #{tpu_custom_call.1} parent=1 // pred_region
      _
    $region9: #{tpu_custom_call.1} parent=1 // pred_fallthru
      _
    // Predicated region
    $region10: #{tpu_custom_call.1} parent=1 // pred_check
      _
    $region11: #{tpu_custom_call.1} parent=1 // pred_check_branch
      %18 = sbr.rel (0) target = $region13
    $region12: #{tpu_custom_call.1} parent=1 // pred_region
      _
    $region13: #{tpu_custom_call.1} parent=1 // pred_fallthru
      _
    // Predicated region
    $region14: #{tpu_custom_call.1} parent=1 // pred_check
      _
    $region15: #{tpu_custom_call.1} parent=1 // pred_check_branch
      %20 = sbr.rel (0) target = $region17
    $region16: #{tpu_custom_call.1} parent=1 // pred_region
      _
    $region17: #{tpu_custom_call.1} parent=1 // pred_fallthru
      _
    // Predicated region
    $region18: #{tpu_custom_call.1} parent=1 // pred_check
      _
    $region19: #{tpu_custom_call.1} parent=1 // pred_check_branch
      %22 = sbr.rel (0) target = $region21
    $region20: #{tpu_custom_call.1} parent=1 // pred_region
      _
    $region21: #{tpu_custom_call.1} parent=1 // pred_fallthru
      _
    // Predicated region
    $region22: #{tpu_custom_call.1} parent=1 // pred_check
      _
    $region23: #{tpu_custom_call.1} parent=1 // pred_check_branch
      %24 = sbr.rel (0) target = $region25
    $region24: #{tpu_custom_call.1} parent=1 // pred_region
      _
    $region25: #{tpu_custom_call.1} parent=1 // pred_fallthru
      _
    // Predicated region
    $region26: #{tpu_custom_call.1} parent=1 // pred_check
      _
    $region27: #{tpu_custom_call.1} parent=1 // pred_check_branch
      %26 = sbr.rel (0) target = $region29
    $region28: #{tpu_custom_call.1} parent=1 // pred_region
      _
    $region29: #{tpu_custom_call.1} parent=1 // pred_fallthru
      _
    %v27 = vld [vmem:[%s0] sm:$0xff]
    %v28 = vld [vmem:[%s0 + $0x8] sm:$0xff]
    %v29 = vld [vmem:[%s1] sm:$0xff]
    %v30 = vld [vmem:[%s1 + $0x8] sm:$0xff]
    %v31 = vld [vmem:[%s1 + $0x10] sm:$0xff]
    %v32 = vld [vmem:[%s1 + $0x18] sm:$0xff]
    %v33 = vld [vmem:[%s1 + $0x20] sm:$0xff]
    %v34 = vld [vmem:[%s1 + $0x28] sm:$0xff]
    %v35 = vld [vmem:[%s1 + $0x30] sm:$0xff]
    %v36 = vld [vmem:[%s1 + $0x38] sm:$0xff]
    %v37 = vld [vmem:[%s1 + $0x40] sm:$0xff]
    %v38 = vld [vmem:[%s1 + $0x48] sm:$0xff]
    %v39 = vld [vmem:[%s1 + $0x50] sm:$0xff]
    %v40 = vld [vmem:[%s1 + $0x58] sm:$0xff]
    %v41 = vld [vmem:[%s1 + $0x60] sm:$0xff]
    %v42 = vld [vmem:[%s1 + $0x68] sm:$0xff]
    %v43 = vld [vmem:[%s1 + $0x70] sm:$0xff]
    %v44 = vld [vmem:[%s1 + $0x78] sm:$0xff]
    %v45 = vld [vmem:[%s4] sm:$0xff]
    %v46 = vld [vmem:[%s4 + $0x20] sm:$0x3]
    %v47 = vld [vmem:[%s4 + $0x28] sm:$0x3]
    %v48 = vld [vmem:[%s4 + $0x30] sm:$0x3]
    %v49 = vld [vmem:[%s4 + $0x38] sm:$0x3]
    %v50 = vperm.slane %v45, 0
    %vm51 = vcmask 261120
    %v53 = vsel %vm51, %v27, 0
    %v56 = vsel %vm51, %v28, 0
    %58 = vmatpush.msra.mxu0 0.0
    %59 = vmatpush.msra.mxu0 0.0
    %60 = vmatpush.msra.mxu0 0.0
    %61 = vmatpush.msra.mxu0 0.0
    %62 = vmatpush.msra.mxu0 0.0
    %63 = vmatpush.msra.mxu0 0.0
    %64 = vmatpush.msra.mxu0 0.0
    %65 = vmatpush.msra.mxu0 0.0
    %66 = vmatpush.msra.mxu0 0.0
    %67 = vmatpush.msra.mxu0 0.0
    %68 = vmatpush.msra.mxu0 0.0
    %69 = vmatpush.msra.mxu0 0.0
    %70 = vmatpush.msra.mxu0 %v32
    %71 = vmatpush.msra.mxu0 %v31
    %72 = vmatpush.msra.mxu0 %v30
    %73 = vmatpush.msra.mxu0 %v29
    %74 = vmatmul.f32.gmra.mxu0 %v53
    %v75 = vpop.f32.mrf.mxu0
    %v76 = vadd.f32 %v50, %v75
    %77 = vmatmul.f32.gmra.mxu0 %v56
    %v78 = vpop.f32.mrf.mxu0
    %v79 = vadd.f32 %v50, %v78
    %80 = vdwg.mxu0
    %v81 = vperm.slane %v45, 1
    %82 = vmatpush.msra.mxu0 0.0
    %83 = vmatpush.msra.mxu0 0.0
    %84 = vmatpush.msra.mxu0 0.0
    %85 = vmatpush.msra.mxu0 0.0
    %86 = vmatpush.msra.mxu0 0.0
    %87 = vmatpush.msra.mxu0 0.0
    %88 = vmatpush.msra.mxu0 0.0
    %89 = vmatpush.msra.mxu0 0.0
    %90 = vmatpush.msra.mxu0 0.0
    %91 = vmatpush.msra.mxu0 0.0
    %92 = vmatpush.msra.mxu0 0.0
    %93 = vmatpush.msra.mxu0 0.0
    %94 = vmatpush.msra.mxu0 %v36
    %95 = vmatpush.msra.mxu0 %v35
    %96 = vmatpush.msra.mxu0 %v34
    %97 = vmatpush.msra.mxu0 %v33
    %98 = vmatmul.f32.gmra.mxu0 %v53
    %v99 = vpop.f32.mrf.mxu0
    %v100 = vadd.f32 %v81, %v99
    %101 = vmatmul.f32.gmra.mxu0 %v56
    %v102 = vpop.f32.mrf.mxu0
    %v103 = vadd.f32 %v81, %v102
    %104 = vdwg.mxu0
    %v105 = vperm.slane %v45, 2
    %106 = vmatpush.msra.mxu0 0.0
    %107 = vmatpush.msra.mxu0 0.0
    %108 = vmatpush.msra.mxu0 0.0
    %109 = vmatpush.msra.mxu0 0.0
    %110 = vmatpush.msra.mxu0 0.0
    %111 = vmatpush.msra.mxu0 0.0
    %112 = vmatpush.msra.mxu0 0.0
    %113 = vmatpush.msra.mxu0 0.0
    %114 = vmatpush.msra.mxu0 0.0
    %115 = vmatpush.msra.mxu0 0.0
    %116 = vmatpush.msra.mxu0 0.0
    %117 = vmatpush.msra.mxu0 0.0
    %118 = vmatpush.msra.mxu0 %v40
    %119 = vmatpush.msra.mxu0 %v39
    %120 = vmatpush.msra.mxu0 %v38
    %121 = vmatpush.msra.mxu0 %v37
    %122 = vmatmul.f32.gmra.mxu0 %v53
    %v123 = vpop.f32.mrf.mxu0
    %v124 = vadd.f32 %v105, %v123
    %125 = vmatmul.f32.gmra.mxu0 %v56
    %v126 = vpop.f32.mrf.mxu0
    %v127 = vadd.f32 %v105, %v126
    %128 = vdwg.mxu0
    %131 = vrot.lane.b32.xlu0 %v76, 120
    %v132 = vpop.permute.xlu0 %131
    %133 = vrot.lane.b32.xlu0 %v79, 120
    %v134 = vpop.permute.xlu0 %133
    %135 = vrot.lane.b32.xlu0 %v76, 112
    %v136 = vpop.permute.xlu0 %135
    %137 = vrot.lane.b32.xlu0 %v79, 112
    %v138 = vpop.permute.xlu0 %137
    %139 = vrot.lane.b32.xlu0 %v76, 104
    %v140 = vpop.permute.xlu0 %139
    %141 = vrot.lane.b32.xlu0 %v79, 104
    %v142 = vpop.permute.xlu0 %141
    %145 = vrot.lane.b32.xlu0 %v100, 120
    %v146 = vpop.permute.xlu0 %145
    %147 = vrot.lane.b32.xlu0 %v103, 120
    %v148 = vpop.permute.xlu0 %147
    %149 = vrot.lane.b32.xlu0 %v100, 112
    %v150 = vpop.permute.xlu0 %149
    %151 = vrot.lane.b32.xlu0 %v103, 112
    %v152 = vpop.permute.xlu0 %151
    %153 = vrot.lane.b32.xlu0 %v100, 104
    %v154 = vpop.permute.xlu0 %153
    %155 = vrot.lane.b32.xlu0 %v103, 104
    %v156 = vpop.permute.xlu0 %155
    %159 = vrot.lane.b32.xlu0 %v124, 120
    %v160 = vpop.permute.xlu0 %159
    %161 = vrot.lane.b32.xlu0 %v127, 120
    %v162 = vpop.permute.xlu0 %161
    %165 = vrot.lane.b32.xlu0 %v124, 112
    %v166 = vpop.permute.xlu0 %165
    %167 = vrot.lane.b32.xlu0 %v127, 112
    %v168 = vpop.permute.xlu0 %167
    %171 = vrot.lane.b32.xlu0 %v124, 104
    %v172 = vpop.permute.xlu0 %171
    %173 = vrot.lane.b32.xlu0 %v127, 104
    %v174 = vpop.permute.xlu0 %173
    %vm177 = vcmask 64512
    %v178 = vsel %vm177, %v76, 0
    %v180 = vsel %vm177, %v100, 0
    %182 = vmatpush.xpose.msra.mxu0 0.0
    %183 = vmatpush.xpose.msra.mxu0 0.0
    %184 = vmatpush.xpose.msra.mxu0 0.0
    %185 = vmatpush.xpose.msra.mxu0 0.0
    %186 = vmatpush.xpose.msra.mxu0 0.0
    %187 = vmatpush.xpose.msra.mxu0 0.0
    %188 = vmatpush.xpose.msra.mxu0 0.0
    %189 = vmatpush.xpose.msra.mxu0 0.0
    %190 = vmatpush.xpose.msra.mxu0 0.0
    %191 = vmatpush.xpose.msra.mxu0 0.0
    %192 = vmatpush.xpose.msra.mxu0 0.0
    %193 = vmatpush.xpose.msra.mxu0 0.0
    %194 = vmatpush.xpose.msra.mxu0 0.0
    %195 = vmatpush.xpose.msra.mxu0 0.0
    %196 = vmatpush.xpose.msra.mxu0 0.0
    %197 = vmatpush.xpose.msra.mxu0 %v180
    %198 = vmatmul.f32.gmra.mxu0 %v178
    %v199 = vpop.f32.mrf.mxu0
    %v200 = vadd.f32 0.0, %v199
    %201 = vdwg.mxu0
    %v202 = vsel %vm177, %v79, 0
    %v204 = vsel %vm177, %v103, 0
    %206 = vmatpush.xpose.msra.mxu0 0.0
    %207 = vmatpush.xpose.msra.mxu0 0.0
    %208 = vmatpush.xpose.msra.mxu0 0.0
    %209 = vmatpush.xpose.msra.mxu0 0.0
    %210 = vmatpush.xpose.msra.mxu0 0.0
    %211 = vmatpush.xpose.msra.mxu0 0.0
    %212 = vmatpush.xpose.msra.mxu0 0.0
    %213 = vmatpush.xpose.msra.mxu0 0.0
    %214 = vmatpush.xpose.msra.mxu0 0.0
    %215 = vmatpush.xpose.msra.mxu0 0.0
    %216 = vmatpush.xpose.msra.mxu0 0.0
    %217 = vmatpush.xpose.msra.mxu0 0.0
    %218 = vmatpush.xpose.msra.mxu0 0.0
    %219 = vmatpush.xpose.msra.mxu0 0.0
    %220 = vmatpush.xpose.msra.mxu0 0.0
    %221 = vmatpush.xpose.msra.mxu0 %v204
    %222 = vmatmul.f32.gmra.mxu0 %v202
    %v223 = vpop.f32.mrf.mxu0
    %v224 = vadd.f32 0.0, %v223
    %225 = vdwg.mxu0
    %v226 = vsel %vm177, %v132, 0
    %v228 = vsel %vm177, %v146, 0
    %230 = vmatpush.xpose.msra.mxu0 0.0
    %231 = vmatpush.xpose.msra.mxu0 0.0
    %232 = vmatpush.xpose.msra.mxu0 0.0
    %233 = vmatpush.xpose.msra.mxu0 0.0
    %234 = vmatpush.xpose.msra.mxu0 0.0
    %235 = vmatpush.xpose.msra.mxu0 0.0
    %236 = vmatpush.xpose.msra.mxu0 0.0
    %237 = vmatpush.xpose.msra.mxu0 0.0
    %238 = vmatpush.xpose.msra.mxu0 0.0
    %239 = vmatpush.xpose.msra.mxu0 0.0
    %240 = vmatpush.xpose.msra.mxu0 0.0
    %241 = vmatpush.xpose.msra.mxu0 0.0
    %242 = vmatpush.xpose.msra.mxu0 0.0
    %243 = vmatpush.xpose.msra.mxu0 0.0
    %244 = vmatpush.xpose.msra.mxu0 0.0
    %245 = vmatpush.xpose.msra.mxu0 %v228
    %246 = vmatmul.f32.gmra.mxu0 %v226
    %v247 = vpop.f32.mrf.mxu0
    %v248 = vadd.f32 0.0, %v247
    %249 = vdwg.mxu0
    %v250 = vsel %vm177, %v134, 0
    %v252 = vsel %vm177, %v148, 0
    %254 = vmatpush.xpose.msra.mxu0 0.0
    %255 = vmatpush.xpose.msra.mxu0 0.0
    %256 = vmatpush.xpose.msra.mxu0 0.0
    %257 = vmatpush.xpose.msra.mxu0 0.0
    %258 = vmatpush.xpose.msra.mxu0 0.0
    %259 = vmatpush.xpose.msra.mxu0 0.0
    %260 = vmatpush.xpose.msra.mxu0 0.0
    %261 = vmatpush.xpose.msra.mxu0 0.0
    %262 = vmatpush.xpose.msra.mxu0 0.0
    %263 = vmatpush.xpose.msra.mxu0 0.0
    %264 = vmatpush.xpose.msra.mxu0 0.0
    %265 = vmatpush.xpose.msra.mxu0 0.0
    %266 = vmatpush.xpose.msra.mxu0 0.0
    %267 = vmatpush.xpose.msra.mxu0 0.0
    %268 = vmatpush.xpose.msra.mxu0 0.0
    %269 = vmatpush.xpose.msra.mxu0 %v252
    %270 = vmatmul.f32.gmra.mxu0 %v250
    %v271 = vpop.f32.mrf.mxu0
    %v272 = vadd.f32 0.0, %v271
    %273 = vdwg.mxu0
    %v274 = vsel %vm177, %v136, 0
    %v276 = vsel %vm177, %v150, 0
    %278 = vmatpush.xpose.msra.mxu0 0.0
    %279 = vmatpush.xpose.msra.mxu0 0.0
    %280 = vmatpush.xpose.msra.mxu0 0.0
    %281 = vmatpush.xpose.msra.mxu0 0.0
    %282 = vmatpush.xpose.msra.mxu0 0.0
    %283 = vmatpush.xpose.msra.mxu0 0.0
    %284 = vmatpush.xpose.msra.mxu0 0.0
    %285 = vmatpush.xpose.msra.mxu0 0.0
    %286 = vmatpush.xpose.msra.mxu0 0.0
    %287 = vmatpush.xpose.msra.mxu0 0.0
    %288 = vmatpush.xpose.msra.mxu0 0.0
    %289 = vmatpush.xpose.msra.mxu0 0.0
    %290 = vmatpush.xpose.msra.mxu0 0.0
    %291 = vmatpush.xpose.msra.mxu0 0.0
    %292 = vmatpush.xpose.msra.mxu0 0.0
    %293 = vmatpush.xpose.msra.mxu0 %v276
    %294 = vmatmul.f32.gmra.mxu0 %v274
    %v295 = vpop.f32.mrf.mxu0
    %v296 = vadd.f32 0.0, %v295
    %297 = vdwg.mxu0
    %v298 = vsel %vm177, %v138, 0
    %v300 = vsel %vm177, %v152, 0
    %302 = vmatpush.xpose.msra.mxu0 0.0
    %303 = vmatpush.xpose.msra.mxu0 0.0
    %304 = vmatpush.xpose.msra.mxu0 0.0
    %305 = vmatpush.xpose.msra.mxu0 0.0
    %306 = vmatpush.xpose.msra.mxu0 0.0
    %307 = vmatpush.xpose.msra.mxu0 0.0
    %308 = vmatpush.xpose.msra.mxu0 0.0
    %309 = vmatpush.xpose.msra.mxu0 0.0
    %310 = vmatpush.xpose.msra.mxu0 0.0
    %311 = vmatpush.xpose.msra.mxu0 0.0
    %312 = vmatpush.xpose.msra.mxu0 0.0
    %313 = vmatpush.xpose.msra.mxu0 0.0
    %314 = vmatpush.xpose.msra.mxu0 0.0
    %315 = vmatpush.xpose.msra.mxu0 0.0
    %316 = vmatpush.xpose.msra.mxu0 0.0
    %317 = vmatpush.xpose.msra.mxu0 %v300
    %318 = vmatmul.f32.gmra.mxu0 %v298
    %v319 = vpop.f32.mrf.mxu0
    %v320 = vadd.f32 0.0, %v319
    %321 = vdwg.mxu0
    %v322 = vsel %vm177, %v140, 0
    %v324 = vsel %vm177, %v154, 0
    %326 = vmatpush.xpose.msra.mxu0 0.0
    %327 = vmatpush.xpose.msra.mxu0 0.0
    %328 = vmatpush.xpose.msra.mxu0 0.0
    %329 = vmatpush.xpose.msra.mxu0 0.0
    %330 = vmatpush.xpose.msra.mxu0 0.0
    %331 = vmatpush.xpose.msra.mxu0 0.0
    %332 = vmatpush.xpose.msra.mxu0 0.0
    %333 = vmatpush.xpose.msra.mxu0 0.0
    %334 = vmatpush.xpose.msra.mxu0 0.0
    %335 = vmatpush.xpose.msra.mxu0 0.0
    %336 = vmatpush.xpose.msra.mxu0 0.0
    %337 = vmatpush.xpose.msra.mxu0 0.0
    %338 = vmatpush.xpose.msra.mxu0 0.0
    %339 = vmatpush.xpose.msra.mxu0 0.0
    %340 = vmatpush.xpose.msra.mxu0 0.0
    %341 = vmatpush.xpose.msra.mxu0 %v324
    %342 = vmatmul.f32.gmra.mxu0 %v322
    %v343 = vpop.f32.mrf.mxu0
    %v344 = vadd.f32 0.0, %v343
    %345 = vdwg.mxu0
    %v346 = vsel %vm177, %v142, 0
    %v348 = vsel %vm177, %v156, 0
    %350 = vmatpush.xpose.msra.mxu0 0.0
    %351 = vmatpush.xpose.msra.mxu0 0.0
    %352 = vmatpush.xpose.msra.mxu0 0.0
    %353 = vmatpush.xpose.msra.mxu0 0.0
    %354 = vmatpush.xpose.msra.mxu0 0.0
    %355 = vmatpush.xpose.msra.mxu0 0.0
    %356 = vmatpush.xpose.msra.mxu0 0.0
    %357 = vmatpush.xpose.msra.mxu0 0.0
    %358 = vmatpush.xpose.msra.mxu0 0.0
    %359 = vmatpush.xpose.msra.mxu0 0.0
    %360 = vmatpush.xpose.msra.mxu0 0.0
    %361 = vmatpush.xpose.msra.mxu0 0.0
    %362 = vmatpush.xpose.msra.mxu0 0.0
    %363 = vmatpush.xpose.msra.mxu0 0.0
    %364 = vmatpush.xpose.msra.mxu0 0.0
    %365 = vmatpush.xpose.msra.mxu0 %v348
    %366 = vmatmul.f32.gmra.mxu0 %v346
    %v367 = vpop.f32.mrf.mxu0
    %v368 = vadd.f32 0.0, %v367
    %369 = vdwg.mxu0
    %v370 = vsel %vm177, %v200, -inf
    %371 = vmax.xlane.f32.xlu0 %v370
    %v372 = vpop.xlane.xlu0 %371
    %v373 = vsel %vm177, %v224, -inf
    %374 = vmax.xlane.f32.xlu0 %v373
    %v375 = vpop.xlane.xlu0 %374
    %v376 = vsel %vm177, %v248, -inf
    %377 = vmax.xlane.f32.xlu0 %v376
    %v378 = vpop.xlane.xlu0 %377
    %v379 = vsel %vm177, %v272, -inf
    %380 = vmax.xlane.f32.xlu0 %v379
    %v381 = vpop.xlane.xlu0 %380
    %v382 = vsel %vm177, %v296, -inf
    %383 = vmax.xlane.f32.xlu0 %v382
    %v384 = vpop.xlane.xlu0 %383
    %v385 = vsel %vm177, %v320, -inf
    %386 = vmax.xlane.f32.xlu0 %v385
    %v387 = vpop.xlane.xlu0 %386
    %v388 = vsel %vm177, %v344, -inf
    %389 = vmax.xlane.f32.xlu0 %v388
    %v390 = vpop.xlane.xlu0 %389
    %v391 = vsel %vm177, %v368, -inf
    %392 = vmax.xlane.f32.xlu0 %v391
    %v393 = vpop.xlane.xlu0 %392
    %v394 = vsub.f32 %v200, %v372
    %v395 = vsub.f32 %v224, %v375
    %v396 = vsub.f32 %v248, %v378
    %v397 = vsub.f32 %v272, %v381
    %v398 = vsub.f32 %v296, %v384
    %v399 = vsub.f32 %v320, %v387
    %v400 = vsub.f32 %v344, %v390
    %v401 = vsub.f32 %v368, %v393
    %v402 = vmul.f32 %v394, 1.442695
    %v403 = vpow.pop %v402
    %v404 = vmul.f32 %v395, 1.442695
    %v405 = vpow.pop %v404
    %v406 = vmul.f32 %v396, 1.442695
    %v407 = vpow.pop %v406
    %v408 = vmul.f32 %v397, 1.442695
    %v409 = vpow.pop %v408
    %v410 = vmul.f32 %v398, 1.442695
    %v411 = vpow.pop %v410
    %v412 = vmul.f32 %v399, 1.442695
    %v413 = vpow.pop %v412
    %v414 = vmul.f32 %v400, 1.442695
    %v415 = vpow.pop %v414
    %v416 = vmul.f32 %v401, 1.442695
    %v417 = vpow.pop %v416
    %v418 = vsel %vm177, %v403, 0.0
    %419 = vadd.xlane.f32.xlu0 %v418
    %v420 = vpop.xlane.xlu0 %419
    %v421 = vsel %vm177, %v405, 0.0
    %422 = vadd.xlane.f32.xlu0 %v421
    %v423 = vpop.xlane.xlu0 %422
    %v424 = vsel %vm177, %v407, 0.0
    %425 = vadd.xlane.f32.xlu0 %v424
    %v426 = vpop.xlane.xlu0 %425
    %v427 = vsel %vm177, %v409, 0.0
    %428 = vadd.xlane.f32.xlu0 %v427
    %v429 = vpop.xlane.xlu0 %428
    %v430 = vsel %vm177, %v411, 0.0
    %431 = vadd.xlane.f32.xlu0 %v430
    %v432 = vpop.xlane.xlu0 %431
    %v433 = vsel %vm177, %v413, 0.0
    %434 = vadd.xlane.f32.xlu0 %v433
    %v435 = vpop.xlane.xlu0 %434
    %v436 = vsel %vm177, %v415, 0.0
    %437 = vadd.xlane.f32.xlu0 %v436
    %v438 = vpop.xlane.xlu0 %437
    %v439 = vsel %vm177, %v417, 0.0
    %440 = vadd.xlane.f32.xlu0 %v439
    %v441 = vpop.xlane.xlu0 %440
    %v442 = vrcp.pop %v420
    %v443 = vrcp.pop %v423
    %v444 = vrcp.pop %v426
    %v445 = vrcp.pop %v429
    %v446 = vrcp.pop %v432
    %v447 = vrcp.pop %v435
    %v448 = vrcp.pop %v438
    %v449 = vrcp.pop %v441
    %v450 = vmul.f32 %v403, %v442
    %v451 = vmul.f32 %v405, %v443
    %v452 = vmul.f32 %v407, %v444
    %v453 = vmul.f32 %v409, %v445
    %v454 = vmul.f32 %v411, %v446
    %v455 = vmul.f32 %v413, %v447
    %v456 = vmul.f32 %v415, %v448
    %v457 = vmul.f32 %v417, %v449
    %v459 = vsel %vm177, %v450, 0
    %461 = vmatpush.msra.mxu0 0.0
    %462 = vmatpush.msra.mxu0 0.0
    %463 = vmatpush.msra.mxu0 0.0
    %464 = vmatpush.msra.mxu0 0.0
    %465 = vmatpush.msra.mxu0 0.0
    %466 = vmatpush.msra.mxu0 0.0
    %467 = vmatpush.msra.mxu0 0.0
    %468 = vmatpush.msra.mxu0 0.0
    %469 = vmatpush.msra.mxu0 0.0
    %470 = vmatpush.msra.mxu0 0.0
    %471 = vmatpush.msra.mxu0 0.0
    %472 = vmatpush.msra.mxu0 0.0
    %473 = vmatpush.msra.mxu0 0.0
    %474 = vmatpush.msra.mxu0 0.0
    %475 = vmatpush.msra.mxu0 0.0
    %476 = vmatpush.msra.mxu0 %v124
    %477 = vmatmul.f32.gmra.mxu0 %v459
    %v478 = vpop.f32.mrf.mxu0
    %v479 = vadd.f32 0.0, %v478
    %480 = vdwg.mxu0
    %v482 = vsel %vm177, %v451, 0
    %484 = vmatpush.msra.mxu0 0.0
    %485 = vmatpush.msra.mxu0 0.0
    %486 = vmatpush.msra.mxu0 0.0
    %487 = vmatpush.msra.mxu0 0.0
    %488 = vmatpush.msra.mxu0 0.0
    %489 = vmatpush.msra.mxu0 0.0
    %490 = vmatpush.msra.mxu0 0.0
    %491 = vmatpush.msra.mxu0 0.0
    %492 = vmatpush.msra.mxu0 0.0
    %493 = vmatpush.msra.mxu0 0.0
    %494 = vmatpush.msra.mxu0 0.0
    %495 = vmatpush.msra.mxu0 0.0
    %496 = vmatpush.msra.mxu0 0.0
    %497 = vmatpush.msra.mxu0 0.0
    %498 = vmatpush.msra.mxu0 0.0
    %499 = vmatpush.msra.mxu0 %v127
    %500 = vmatmul.f32.gmra.mxu0 %v482
    %v501 = vpop.f32.mrf.mxu0
    %v502 = vadd.f32 0.0, %v501
    %503 = vdwg.mxu0
    %v505 = vsel %vm177, %v452, 0
    %507 = vmatpush.msra.mxu0 0.0
    %508 = vmatpush.msra.mxu0 0.0
    %509 = vmatpush.msra.mxu0 0.0
    %510 = vmatpush.msra.mxu0 0.0
    %511 = vmatpush.msra.mxu0 0.0
    %512 = vmatpush.msra.mxu0 0.0
    %513 = vmatpush.msra.mxu0 0.0
    %514 = vmatpush.msra.mxu0 0.0
    %515 = vmatpush.msra.mxu0 0.0
    %516 = vmatpush.msra.mxu0 0.0
    %517 = vmatpush.msra.mxu0 0.0
    %518 = vmatpush.msra.mxu0 0.0
    %519 = vmatpush.msra.mxu0 0.0
    %520 = vmatpush.msra.mxu0 0.0
    %521 = vmatpush.msra.mxu0 0.0
    %522 = vmatpush.msra.mxu0 %v160
    %523 = vmatmul.f32.gmra.mxu0 %v505
    %v524 = vpop.f32.mrf.mxu0
    %v525 = vadd.f32 0.0, %v524
    %526 = vdwg.mxu0
    %v528 = vsel %vm177, %v453, 0
    %530 = vmatpush.msra.mxu0 0.0
    %531 = vmatpush.msra.mxu0 0.0
    %532 = vmatpush.msra.mxu0 0.0
    %533 = vmatpush.msra.mxu0 0.0
    %534 = vmatpush.msra.mxu0 0.0
    %535 = vmatpush.msra.mxu0 0.0
    %536 = vmatpush.msra.mxu0 0.0
    %537 = vmatpush.msra.mxu0 0.0
    %538 = vmatpush.msra.mxu0 0.0
    %539 = vmatpush.msra.mxu0 0.0
    %540 = vmatpush.msra.mxu0 0.0
    %541 = vmatpush.msra.mxu0 0.0
    %542 = vmatpush.msra.mxu0 0.0
    %543 = vmatpush.msra.mxu0 0.0
    %544 = vmatpush.msra.mxu0 0.0
    %545 = vmatpush.msra.mxu0 %v162
    %546 = vmatmul.f32.gmra.mxu0 %v528
    %v547 = vpop.f32.mrf.mxu0
    %v548 = vadd.f32 0.0, %v547
    %549 = vdwg.mxu0
    %v551 = vsel %vm177, %v454, 0
    %553 = vmatpush.msra.mxu0 0.0
    %554 = vmatpush.msra.mxu0 0.0
    %555 = vmatpush.msra.mxu0 0.0
    %556 = vmatpush.msra.mxu0 0.0
    %557 = vmatpush.msra.mxu0 0.0
    %558 = vmatpush.msra.mxu0 0.0
    %559 = vmatpush.msra.mxu0 0.0
    %560 = vmatpush.msra.mxu0 0.0
    %561 = vmatpush.msra.mxu0 0.0
    %562 = vmatpush.msra.mxu0 0.0
    %563 = vmatpush.msra.mxu0 0.0
    %564 = vmatpush.msra.mxu0 0.0
    %565 = vmatpush.msra.mxu0 0.0
    %566 = vmatpush.msra.mxu0 0.0
    %567 = vmatpush.msra.mxu0 0.0
    %568 = vmatpush.msra.mxu0 %v166
    %569 = vmatmul.f32.gmra.mxu0 %v551
    %v570 = vpop.f32.mrf.mxu0
    %v571 = vadd.f32 0.0, %v570
    %572 = vdwg.mxu0
    %v574 = vsel %vm177, %v455, 0
    %576 = vmatpush.msra.mxu0 0.0
    %577 = vmatpush.msra.mxu0 0.0
    %578 = vmatpush.msra.mxu0 0.0
    %579 = vmatpush.msra.mxu0 0.0
    %580 = vmatpush.msra.mxu0 0.0
    %581 = vmatpush.msra.mxu0 0.0
    %582 = vmatpush.msra.mxu0 0.0
    %583 = vmatpush.msra.mxu0 0.0
    %584 = vmatpush.msra.mxu0 0.0
    %585 = vmatpush.msra.mxu0 0.0
    %586 = vmatpush.msra.mxu0 0.0
    %587 = vmatpush.msra.mxu0 0.0
    %588 = vmatpush.msra.mxu0 0.0
    %589 = vmatpush.msra.mxu0 0.0
    %590 = vmatpush.msra.mxu0 0.0
    %591 = vmatpush.msra.mxu0 %v168
    %592 = vmatmul.f32.gmra.mxu0 %v574
    %v593 = vpop.f32.mrf.mxu0
    %v594 = vadd.f32 0.0, %v593
    %595 = vdwg.mxu0
    %v597 = vsel %vm177, %v456, 0
    %599 = vmatpush.msra.mxu0 0.0
    %600 = vmatpush.msra.mxu0 0.0
    %601 = vmatpush.msra.mxu0 0.0
    %602 = vmatpush.msra.mxu0 0.0
    %603 = vmatpush.msra.mxu0 0.0
    %604 = vmatpush.msra.mxu0 0.0
    %605 = vmatpush.msra.mxu0 0.0
    %606 = vmatpush.msra.mxu0 0.0
    %607 = vmatpush.msra.mxu0 0.0
    %608 = vmatpush.msra.mxu0 0.0
    %609 = vmatpush.msra.mxu0 0.0
    %610 = vmatpush.msra.mxu0 0.0
    %611 = vmatpush.msra.mxu0 0.0
    %612 = vmatpush.msra.mxu0 0.0
    %613 = vmatpush.msra.mxu0 0.0
    %614 = vmatpush.msra.mxu0 %v172
    %615 = vmatmul.f32.gmra.mxu0 %v597
    %v616 = vpop.f32.mrf.mxu0
    %v617 = vadd.f32 0.0, %v616
    %618 = vdwg.mxu0
    %v620 = vsel %vm177, %v457, 0
    %622 = vmatpush.msra.mxu0 0.0
    %623 = vmatpush.msra.mxu0 0.0
    %624 = vmatpush.msra.mxu0 0.0
    %625 = vmatpush.msra.mxu0 0.0
    %626 = vmatpush.msra.mxu0 0.0
    %627 = vmatpush.msra.mxu0 0.0
    %628 = vmatpush.msra.mxu0 0.0
    %629 = vmatpush.msra.mxu0 0.0
    %630 = vmatpush.msra.mxu0 0.0
    %631 = vmatpush.msra.mxu0 0.0
    %632 = vmatpush.msra.mxu0 0.0
    %633 = vmatpush.msra.mxu0 0.0
    %634 = vmatpush.msra.mxu0 0.0
    %635 = vmatpush.msra.mxu0 0.0
    %636 = vmatpush.msra.mxu0 0.0
    %637 = vmatpush.msra.mxu0 %v174
    %638 = vmatmul.f32.gmra.mxu0 %v620
    %v639 = vpop.f32.mrf.mxu0
    %v640 = vadd.f32 0.0, %v639
    %641 = vdwg.mxu0
    %644 = vrot.lane.b32.xlu0 %v525, 8
    %v645 = vpop.permute.xlu0 %644
    %646 = vrot.lane.b32.xlu0 %v548, 8
    %v647 = vpop.permute.xlu0 %646
    %652 = vrot.lane.b32.xlu0 %v571, 16
    %v653 = vpop.permute.xlu0 %652
    %654 = vrot.lane.b32.xlu0 %v594, 16
    %v655 = vpop.permute.xlu0 %654
    %660 = vrot.lane.b32.xlu0 %v617, 24
    %v661 = vpop.permute.xlu0 %660
    %662 = vrot.lane.b32.xlu0 %v640, 24
    %v663 = vpop.permute.xlu0 %662
    %v666 = vsel %vm177, %v479, %v645
    %v667 = vsel %vm177, %v502, %v647
    %vm668 = vcmask 130048
    %v669 = vsel %vm668, %v666, %v653
    %v670 = vsel %vm668, %v667, %v655
    %vm671 = vcmask 195584
    %v672 = vsel %vm671, %v669, %v661
    %v673 = vsel %vm671, %v670, %v663
    %v674 = vperm.slane %v45, 3
    %v676 = vsel %vm51, %v672, 0
    %v679 = vsel %vm51, %v673, 0
    %681 = vmatpush.msra.mxu0 0.0
    %682 = vmatpush.msra.mxu0 0.0
    %683 = vmatpush.msra.mxu0 0.0
    %684 = vmatpush.msra.mxu0 0.0
    %685 = vmatpush.msra.mxu0 0.0
    %686 = vmatpush.msra.mxu0 0.0
    %687 = vmatpush.msra.mxu0 0.0
    %688 = vmatpush.msra.mxu0 0.0
    %689 = vmatpush.msra.mxu0 0.0
    %690 = vmatpush.msra.mxu0 0.0
    %691 = vmatpush.msra.mxu0 0.0
    %692 = vmatpush.msra.mxu0 0.0
    %693 = vmatpush.msra.mxu0 %v44
    %694 = vmatpush.msra.mxu0 %v43
    %695 = vmatpush.msra.mxu0 %v42
    %696 = vmatpush.msra.mxu0 %v41
    %697 = vmatmul.f32.gmra.mxu0 %v676
    %v698 = vpop.f32.mrf.mxu0
    %v699 = vadd.f32 %v674, %v698
    %700 = vmatmul.f32.gmra.mxu0 %v679
    %v701 = vpop.f32.mrf.mxu0
    %v702 = vadd.f32 %v674, %v701
    %703 = vdwg.mxu0
    %v704 = vadd.f32 %v27, %v699
    %v705 = vadd.f32 %v28, %v702
    %v706 = vsel %vm51, %v704, 0.0
    %707 = vadd.xlane.f32.xlu0 %v706
    %v708 = vpop.xlane.xlu0 %707
    %v709 = vsel %vm51, %v705, 0.0
    %710 = vadd.xlane.f32.xlu0 %v709
    %v711 = vpop.xlane.xlu0 %710
    %v712 = vrcp.pop 32.0
    %v713 = vmul.f32 32.0, %v712
    %v714 = vsub.f32 1.0, %v713
    %v715 = vmul.f32 %v712, %v714
    %v716 = vadd.f32 %v712, %v715
    %vm717 = vweird.f32 %v712
    %v718 = vsel %vm717, %v712, %v716
    %v719 = vmul.f32 %v708, %v718
    %v720 = vmul.f32 %v711, %v718
    %v721 = vsub.f32 %v704, %v719
    %v722 = vsub.f32 %v705, %v720
    %v723 = vmul.f32 %v721, %v721
    %v724 = vmul.f32 %v722, %v722
    %v725 = vsel %vm51, %v723, 0.0
    %726 = vadd.xlane.f32.xlu0 %v725
    %v727 = vpop.xlane.xlu0 %726
    %v728 = vsel %vm51, %v724, 0.0
    %729 = vadd.xlane.f32.xlu0 %v728
    %v730 = vpop.xlane.xlu0 %729
    %v731 = vmul.f32 %v727, %v718
    %v732 = vmul.f32 %v730, %v718
    %v733 = vadd.f32 %v731, 1e-05
    %v734 = vadd.f32 %v732, 1e-05
    %v735 = vrsqrt.pop %v733
    %v736 = vmul.f32 %v735, %v733
    %v737 = vmul.f32 %v736, %v735
    %v738 = vmul.f32 0.5, %v737
    %v739 = vsub.f32 1.5, %v738
    %v740 = vmul.f32 %v735, %v739
    %vm741 = vweird.f32 %v733
    %vm742 = vweird.f32 %v735
    %vm743 = vmor %vm741, %vm742
    %v744 = vsel %vm743, %v735, %v740
    %v745 = vrsqrt.pop %v734
    %v746 = vmul.f32 %v745, %v734
    %v747 = vmul.f32 %v746, %v745
    %v748 = vmul.f32 0.5, %v747
    %v749 = vsub.f32 1.5, %v748
    %v750 = vmul.f32 %v745, %v749
    %vm751 = vweird.f32 %v734
    %vm752 = vweird.f32 %v745
    %vm753 = vmor %vm751, %vm752
    %v754 = vsel %vm753, %v745, %v750
    %v755 = vmul.f32 %v721, %v744
    %v756 = vmul.f32 %v722, %v754
    %v757 = vperm.slane %v45, 4
    %v758 = vmul.f32 %v755, %v757
    %v759 = vmul.f32 %v756, %v757
    %v760 = vperm.slane %v45, 5
    %v761 = vadd.f32 %v758, %v760
    %v762 = vadd.f32 %v759, %v760
    %v763 = vld [vmem:[%s2] sm:$0xff]
    %v764 = vld [vmem:[%s2 + $0x8] sm:$0xff]
    %v765 = vld [vmem:[%s2 + $0x10] sm:$0xff]
    %v766 = vld [vmem:[%s2 + $0x18] sm:$0xff]
    %v767 = vld [vmem:[%s2 + $0x20] sm:$0xff]
    %v768 = vld [vmem:[%s2 + $0x28] sm:$0xff]
    %v769 = vld [vmem:[%s2 + $0x30] sm:$0xff]
    %v770 = vld [vmem:[%s2 + $0x38] sm:$0xff]
    %v771 = vld [vmem:[%s2 + $0x40] sm:$0xff]
    %v772 = vld [vmem:[%s2 + $0x48] sm:$0xff]
    %v773 = vld [vmem:[%s2 + $0x50] sm:$0xff]
    %v774 = vld [vmem:[%s2 + $0x58] sm:$0xff]
    %v775 = vld [vmem:[%s2 + $0x60] sm:$0xff]
    %v776 = vld [vmem:[%s2 + $0x68] sm:$0xff]
    %v777 = vld [vmem:[%s2 + $0x70] sm:$0xff]
    %v778 = vld [vmem:[%s2 + $0x78] sm:$0xff]
    %v779 = vperm.slane %v46, 1
    %v780 = vperm.slane %v47, 1
    %v781 = vperm.slane %v48, 1
    %v782 = vperm.slane %v49, 1
    %v784 = vsel %vm51, %v761, 0
    %v787 = vsel %vm51, %v762, 0
    %789 = vmatpush.msra.mxu0 0.0
    %790 = vmatpush.msra.mxu0 0.0
    %791 = vmatpush.msra.mxu0 0.0
    %792 = vmatpush.msra.mxu0 0.0
    %793 = vmatpush.msra.mxu0 0.0
    %794 = vmatpush.msra.mxu0 0.0
    %795 = vmatpush.msra.mxu0 0.0
    %796 = vmatpush.msra.mxu0 0.0
    %797 = vmatpush.msra.mxu0 0.0
    %798 = vmatpush.msra.mxu0 0.0
    %799 = vmatpush.msra.mxu0 0.0
    %800 = vmatpush.msra.mxu0 0.0
    %801 = vmatpush.msra.mxu0 %v775
    %802 = vmatpush.msra.mxu0 %v771
    %803 = vmatpush.msra.mxu0 %v767
    %804 = vmatpush.msra.mxu0 %v763
    %805 = vmatmul.f32.gmra.mxu0 %v784
    %v806 = vpop.f32.mrf.mxu0
    %v807 = vadd.f32 %v779, %v806
    %808 = vmatmul.f32.gmra.mxu0 %v787
    %v809 = vpop.f32.mrf.mxu0
    %v810 = vadd.f32 %v779, %v809
    %811 = vdwg.mxu0
    %812 = vmatpush.msra.mxu0 0.0
    %813 = vmatpush.msra.mxu0 0.0
    %814 = vmatpush.msra.mxu0 0.0
    %815 = vmatpush.msra.mxu0 0.0
    %816 = vmatpush.msra.mxu0 0.0
    %817 = vmatpush.msra.mxu0 0.0
    %818 = vmatpush.msra.mxu0 0.0
    %819 = vmatpush.msra.mxu0 0.0
    %820 = vmatpush.msra.mxu0 0.0
    %821 = vmatpush.msra.mxu0 0.0
    %822 = vmatpush.msra.mxu0 0.0
    %823 = vmatpush.msra.mxu0 0.0
    %824 = vmatpush.msra.mxu0 %v776
    %825 = vmatpush.msra.mxu0 %v772
    %826 = vmatpush.msra.mxu0 %v768
    %827 = vmatpush.msra.mxu0 %v764
    %828 = vmatmul.f32.gmra.mxu0 %v784
    %v829 = vpop.f32.mrf.mxu0
    %v830 = vadd.f32 %v780, %v829
    %831 = vmatmul.f32.gmra.mxu0 %v787
    %v832 = vpop.f32.mrf.mxu0
    %v833 = vadd.f32 %v780, %v832
    %834 = vdwg.mxu0
    %835 = vmatpush.msra.mxu0 0.0
    %836 = vmatpush.msra.mxu0 0.0
    %837 = vmatpush.msra.mxu0 0.0
    %838 = vmatpush.msra.mxu0 0.0
    %839 = vmatpush.msra.mxu0 0.0
    %840 = vmatpush.msra.mxu0 0.0
    %841 = vmatpush.msra.mxu0 0.0
    %842 = vmatpush.msra.mxu0 0.0
    %843 = vmatpush.msra.mxu0 0.0
    %844 = vmatpush.msra.mxu0 0.0
    %845 = vmatpush.msra.mxu0 0.0
    %846 = vmatpush.msra.mxu0 0.0
    %847 = vmatpush.msra.mxu0 %v777
    %848 = vmatpush.msra.mxu0 %v773
    %849 = vmatpush.msra.mxu0 %v769
    %850 = vmatpush.msra.mxu0 %v765
    %851 = vmatmul.f32.gmra.mxu0 %v784
    %v852 = vpop.f32.mrf.mxu0
    %v853 = vadd.f32 %v781, %v852
    %854 = vmatmul.f32.gmra.mxu0 %v787
    %v855 = vpop.f32.mrf.mxu0
    %v856 = vadd.f32 %v781, %v855
    %857 = vdwg.mxu0
    %858 = vmatpush.msra.mxu0 0.0
    %859 = vmatpush.msra.mxu0 0.0
    %860 = vmatpush.msra.mxu0 0.0
    %861 = vmatpush.msra.mxu0 0.0
    %862 = vmatpush.msra.mxu0 0.0
    %863 = vmatpush.msra.mxu0 0.0
    %864 = vmatpush.msra.mxu0 0.0
    %865 = vmatpush.msra.mxu0 0.0
    %866 = vmatpush.msra.mxu0 0.0
    %867 = vmatpush.msra.mxu0 0.0
    %868 = vmatpush.msra.mxu0 0.0
    %869 = vmatpush.msra.mxu0 0.0
    %870 = vmatpush.msra.mxu0 %v778
    %871 = vmatpush.msra.mxu0 %v774
    %872 = vmatpush.msra.mxu0 %v770
    %873 = vmatpush.msra.mxu0 %v766
    %874 = vmatmul.f32.gmra.mxu0 %v784
    %v875 = vpop.f32.mrf.mxu0
    %v876 = vadd.f32 %v782, %v875
    %877 = vmatmul.f32.gmra.mxu0 %v787
    %v878 = vpop.f32.mrf.mxu0
    %v879 = vadd.f32 %v782, %v878
    %880 = vdwg.mxu0
    %v881 = vmax.f32 %v807, 0.0
    %v882 = vmax.f32 %v830, 0.0
    %v883 = vmax.f32 %v853, 0.0
    %v884 = vmax.f32 %v876, 0.0
    %v885 = vmax.f32 %v810, 0.0
    %v886 = vmax.f32 %v833, 0.0
    %v887 = vmax.f32 %v856, 0.0
    %v888 = vmax.f32 %v879, 0.0
    %v889 = vld [vmem:[%s3] sm:$0xff]
    %v890 = vld [vmem:[%s3 + $0x8] sm:$0xff]
    %v891 = vld [vmem:[%s3 + $0x10] sm:$0xff]
    %v892 = vld [vmem:[%s3 + $0x18] sm:$0xff]
    %v893 = vld [vmem:[%s3 + $0x20] sm:$0xff]
    %v894 = vld [vmem:[%s3 + $0x28] sm:$0xff]
    %v895 = vld [vmem:[%s3 + $0x30] sm:$0xff]
    %v896 = vld [vmem:[%s3 + $0x38] sm:$0xff]
    %v897 = vld [vmem:[%s3 + $0x40] sm:$0xff]
    %v898 = vld [vmem:[%s3 + $0x48] sm:$0xff]
    %v899 = vld [vmem:[%s3 + $0x50] sm:$0xff]
    %v900 = vld [vmem:[%s3 + $0x58] sm:$0xff]
    %v901 = vld [vmem:[%s3 + $0x60] sm:$0xff]
    %v902 = vld [vmem:[%s3 + $0x68] sm:$0xff]
    %v903 = vld [vmem:[%s3 + $0x70] sm:$0xff]
    %v904 = vld [vmem:[%s3 + $0x78] sm:$0xff]
    %v905 = vld [vmem:[%s3 + $0x80] sm:$0xff]
    %v906 = vld [vmem:[%s3 + $0x88] sm:$0xff]
    %v907 = vld [vmem:[%s3 + $0x90] sm:$0xff]
    %v908 = vld [vmem:[%s3 + $0x98] sm:$0xff]
    %v909 = vld [vmem:[%s3 + $0xa0] sm:$0xff]
    %v910 = vld [vmem:[%s3 + $0xa8] sm:$0xff]
    %v911 = vld [vmem:[%s3 + $0xb0] sm:$0xff]
    %v912 = vld [vmem:[%s3 + $0xb8] sm:$0xff]
    %v913 = vld [vmem:[%s3 + $0xc0] sm:$0xff]
    %v914 = vld [vmem:[%s3 + $0xc8] sm:$0xff]
    %v915 = vld [vmem:[%s3 + $0xd0] sm:$0xff]
    %v916 = vld [vmem:[%s3 + $0xd8] sm:$0xff]
    %v917 = vld [vmem:[%s3 + $0xe0] sm:$0xff]
    %v918 = vld [vmem:[%s3 + $0xe8] sm:$0xff]
    %v919 = vld [vmem:[%s3 + $0xf0] sm:$0xff]
    %v920 = vld [vmem:[%s3 + $0xf8] sm:$0xff]
    %v921 = vld [vmem:[%s3 + $0x100] sm:$0xff]
    %v922 = vld [vmem:[%s3 + $0x108] sm:$0xff]
    %v923 = vld [vmem:[%s3 + $0x110] sm:$0xff]
    %v924 = vld [vmem:[%s3 + $0x118] sm:$0xff]
    %v925 = vld [vmem:[%s3 + $0x120] sm:$0xff]
    %v926 = vld [vmem:[%s3 + $0x128] sm:$0xff]
    %v927 = vld [vmem:[%s3 + $0x130] sm:$0xff]
    %v928 = vld [vmem:[%s3 + $0x138] sm:$0xff]
    %v929 = vld [vmem:[%s3 + $0x140] sm:$0xff]
    %v930 = vld [vmem:[%s3 + $0x148] sm:$0xff]
    %v931 = vld [vmem:[%s3 + $0x150] sm:$0xff]
    %v932 = vld [vmem:[%s3 + $0x158] sm:$0xff]
    %v933 = vld [vmem:[%s3 + $0x160] sm:$0xff]
    %v934 = vld [vmem:[%s3 + $0x168] sm:$0xff]
    %v935 = vld [vmem:[%s3 + $0x170] sm:$0xff]
    %v936 = vld [vmem:[%s3 + $0x178] sm:$0xff]
    %v937 = vld [vmem:[%s3 + $0x180] sm:$0xff]
    %v938 = vld [vmem:[%s3 + $0x188] sm:$0xff]
    %v939 = vld [vmem:[%s3 + $0x190] sm:$0xff]
    %v940 = vld [vmem:[%s3 + $0x198] sm:$0xff]
    %v941 = vld [vmem:[%s3 + $0x1a0] sm:$0xff]
    %v942 = vld [vmem:[%s3 + $0x1a8] sm:$0xff]
    %v943 = vld [vmem:[%s3 + $0x1b0] sm:$0xff]
    %v944 = vld [vmem:[%s3 + $0x1b8] sm:$0xff]
    %v945 = vld [vmem:[%s3 + $0x1c0] sm:$0xff]
    %v946 = vld [vmem:[%s3 + $0x1c8] sm:$0xff]
    %v947 = vld [vmem:[%s3 + $0x1d0] sm:$0xff]
    %v948 = vld [vmem:[%s3 + $0x1d8] sm:$0xff]
    %v949 = vld [vmem:[%s3 + $0x1e0] sm:$0xff]
    %v950 = vld [vmem:[%s3 + $0x1e8] sm:$0xff]
    %v951 = vld [vmem:[%s3 + $0x1f0] sm:$0xff]
    %v952 = vld [vmem:[%s3 + $0x1f8] sm:$0xff]
    %v953 = vperm.slane %v46, 0
    %954 = vmatpush.msra.mxu0 %v904
    %955 = vmatpush.msra.mxu0 %v903
    %956 = vmatpush.msra.mxu0 %v902
    %957 = vmatpush.msra.mxu0 %v901
    %958 = vmatpush.msra.mxu0 %v900
    %959 = vmatpush.msra.mxu0 %v899
    %960 = vmatpush.msra.mxu0 %v898
    %961 = vmatpush.msra.mxu0 %v897
    %962 = vmatpush.msra.mxu0 %v896
    %963 = vmatpush.msra.mxu0 %v895
    %964 = vmatpush.msra.mxu0 %v894
    %965 = vmatpush.msra.mxu0 %v893
    %966 = vmatpush.msra.mxu0 %v892
    %967 = vmatpush.msra.mxu0 %v891
    %968 = vmatpush.msra.mxu0 %v890
    %969 = vmatpush.msra.mxu0 %v889
    %970 = vmatmul.f32.gmra.mxu0 %v881
    %v971 = vpop.f32.mrf.mxu0
    %v972 = vadd.f32 %v953, %v971
    %973 = vmatmul.f32.gmra.mxu0 %v885
    %v974 = vpop.f32.mrf.mxu0
    %v975 = vadd.f32 %v953, %v974
    %976 = vdwg.mxu0
    %977 = vmatpush.msra.mxu0 %v920
    %978 = vmatpush.msra.mxu0 %v919
    %979 = vmatpush.msra.mxu0 %v918
    %980 = vmatpush.msra.mxu0 %v917
    %981 = vmatpush.msra.mxu0 %v916
    %982 = vmatpush.msra.mxu0 %v915
    %983 = vmatpush.msra.mxu0 %v914
    %984 = vmatpush.msra.mxu0 %v913
    %985 = vmatpush.msra.mxu0 %v912
    %986 = vmatpush.msra.mxu0 %v911
    %987 = vmatpush.msra.mxu0 %v910
    %988 = vmatpush.msra.mxu0 %v909
    %989 = vmatpush.msra.mxu0 %v908
    %990 = vmatpush.msra.mxu0 %v907
    %991 = vmatpush.msra.mxu0 %v906
    %992 = vmatpush.msra.mxu0 %v905
    %993 = vmatmul.f32.gmra.mxu0 %v882
    %v994 = vpop.f32.mrf.mxu0
    %v995 = vadd.f32 %v972, %v994
    %996 = vmatmul.f32.gmra.mxu0 %v886
    %v997 = vpop.f32.mrf.mxu0
    %v998 = vadd.f32 %v975, %v997
    %999 = vdwg.mxu0
    %1000 = vmatpush.msra.mxu0 %v936
    %1001 = vmatpush.msra.mxu0 %v935
    %1002 = vmatpush.msra.mxu0 %v934
    %1003 = vmatpush.msra.mxu0 %v933
    %1004 = vmatpush.msra.mxu0 %v932
    %1005 = vmatpush.msra.mxu0 %v931
    %1006 = vmatpush.msra.mxu0 %v930
    %1007 = vmatpush.msra.mxu0 %v929
    %1008 = vmatpush.msra.mxu0 %v928
    %1009 = vmatpush.msra.mxu0 %v927
    %1010 = vmatpush.msra.mxu0 %v926
    %1011 = vmatpush.msra.mxu0 %v925
    %1012 = vmatpush.msra.mxu0 %v924
    %1013 = vmatpush.msra.mxu0 %v923
    %1014 = vmatpush.msra.mxu0 %v922
    %1015 = vmatpush.msra.mxu0 %v921
    %1016 = vmatmul.f32.gmra.mxu0 %v883
    %v1017 = vpop.f32.mrf.mxu0
    %v1018 = vadd.f32 %v995, %v1017
    %1019 = vmatmul.f32.gmra.mxu0 %v887
    %v1020 = vpop.f32.mrf.mxu0
    %v1021 = vadd.f32 %v998, %v1020
    %1022 = vdwg.mxu0
    %1023 = vmatpush.msra.mxu0 %v952
    %1024 = vmatpush.msra.mxu0 %v951
    %1025 = vmatpush.msra.mxu0 %v950
    %1026 = vmatpush.msra.mxu0 %v949
    %1027 = vmatpush.msra.mxu0 %v948
    %1028 = vmatpush.msra.mxu0 %v947
    %1029 = vmatpush.msra.mxu0 %v946
    %1030 = vmatpush.msra.mxu0 %v945
    %1031 = vmatpush.msra.mxu0 %v944
    %1032 = vmatpush.msra.mxu0 %v943
    %1033 = vmatpush.msra.mxu0 %v942
    %1034 = vmatpush.msra.mxu0 %v941
    %1035 = vmatpush.msra.mxu0 %v940
    %1036 = vmatpush.msra.mxu0 %v939
    %1037 = vmatpush.msra.mxu0 %v938
    %1038 = vmatpush.msra.mxu0 %v937
    %1039 = vmatmul.f32.gmra.mxu0 %v884
    %v1040 = vpop.f32.mrf.mxu0
    %v1041 = vadd.f32 %v1018, %v1040
    %1042 = vmatmul.f32.gmra.mxu0 %v888
    %v1043 = vpop.f32.mrf.mxu0
    %v1044 = vadd.f32 %v1021, %v1043
    %1045 = vdwg.mxu0
    %v1046 = vadd.f32 %v761, %v1041
    %v1047 = vadd.f32 %v762, %v1044
    %v1048 = vsel %vm51, %v1046, 0.0
    %1049 = vadd.xlane.f32.xlu0 %v1048
    %v1050 = vpop.xlane.xlu0 %1049
    %v1051 = vsel %vm51, %v1047, 0.0
    %1052 = vadd.xlane.f32.xlu0 %v1051
    %v1053 = vpop.xlane.xlu0 %1052
    %v1054 = vmul.f32 %v1050, %v718
    %v1055 = vmul.f32 %v1053, %v718
    %v1056 = vsub.f32 %v1046, %v1054
    %v1057 = vsub.f32 %v1047, %v1055
    %v1058 = vmul.f32 %v1056, %v1056
    %v1059 = vmul.f32 %v1057, %v1057
    %v1060 = vsel %vm51, %v1058, 0.0
    %1061 = vadd.xlane.f32.xlu0 %v1060
    %v1062 = vpop.xlane.xlu0 %1061
    %v1063 = vsel %vm51, %v1059, 0.0
    %1064 = vadd.xlane.f32.xlu0 %v1063
    %v1065 = vpop.xlane.xlu0 %1064
    %v1066 = vmul.f32 %v1062, %v718
    %v1067 = vmul.f32 %v1065, %v718
    %v1068 = vadd.f32 %v1066, 1e-05
    %v1069 = vadd.f32 %v1067, 1e-05
    %v1070 = vrsqrt.pop %v1068
    %v1071 = vmul.f32 %v1070, %v1068
    %v1072 = vmul.f32 %v1071, %v1070
    %v1073 = vmul.f32 0.5, %v1072
    %v1074 = vsub.f32 1.5, %v1073
    %v1075 = vmul.f32 %v1070, %v1074
    %vm1076 = vweird.f32 %v1068
    %vm1077 = vweird.f32 %v1070
    %vm1078 = vmor %vm1076, %vm1077
    %v1079 = vsel %vm1078, %v1070, %v1075
    %v1080 = vrsqrt.pop %v1069
    %v1081 = vmul.f32 %v1080, %v1069
    %v1082 = vmul.f32 %v1081, %v1080
    %v1083 = vmul.f32 0.5, %v1082
    %v1084 = vsub.f32 1.5, %v1083
    %v1085 = vmul.f32 %v1080, %v1084
    %vm1086 = vweird.f32 %v1069
    %vm1087 = vweird.f32 %v1080
    %vm1088 = vmor %vm1086, %vm1087
    %v1089 = vsel %vm1088, %v1080, %v1085
    %v1090 = vmul.f32 %v1056, %v1079
    %v1091 = vmul.f32 %v1057, %v1089
    %v1092 = vperm.slane %v45, 6
    %v1093 = vmul.f32 %v1090, %v1092
    %v1094 = vmul.f32 %v1091, %v1092
    %v1095 = vperm.slane %v45, 7
    %v1096 = vadd.f32 %v1093, %v1095
    %v1097 = vadd.f32 %v1094, %v1095
    %s1098 = scalar_lea.vmem %s1, 128
    %v1099 = vld [vmem:[%s1098] sm:$0xff]
    %v1100 = vld [vmem:[%s1098 + $0x8] sm:$0xff]
    %v1101 = vld [vmem:[%s1098 + $0x10] sm:$0xff]
    %v1102 = vld [vmem:[%s1098 + $0x18] sm:$0xff]
    %v1103 = vld [vmem:[%s1098 + $0x20] sm:$0xff]
    %v1104 = vld [vmem:[%s1098 + $0x28] sm:$0xff]
    %v1105 = vld [vmem:[%s1098 + $0x30] sm:$0xff]
    %v1106 = vld [vmem:[%s1098 + $0x38] sm:$0xff]
    %v1107 = vld [vmem:[%s1098 + $0x40] sm:$0xff]
    %v1108 = vld [vmem:[%s1098 + $0x48] sm:$0xff]
    %v1109 = vld [vmem:[%s1098 + $0x50] sm:$0xff]
    %v1110 = vld [vmem:[%s1098 + $0x58] sm:$0xff]
    %v1111 = vld [vmem:[%s1098 + $0x60] sm:$0xff]
    %v1112 = vld [vmem:[%s1098 + $0x68] sm:$0xff]
    %v1113 = vld [vmem:[%s1098 + $0x70] sm:$0xff]
    %v1114 = vld [vmem:[%s1098 + $0x78] sm:$0xff]
    %s1115 = scalar_lea.vmem %s4, 64
    %v1116 = vld [vmem:[%s1115] sm:$0xff]
    %v1117 = vld [vmem:[%s1115 + $0x20] sm:$0x3]
    %v1118 = vld [vmem:[%s1115 + $0x28] sm:$0x3]
    %v1119 = vld [vmem:[%s1115 + $0x30] sm:$0x3]
    %v1120 = vld [vmem:[%s1115 + $0x38] sm:$0x3]
    %v1121 = vperm.slane %v1116, 0
    %v1123 = vsel %vm51, %v1096, 0
    %v1126 = vsel %vm51, %v1097, 0
    %1128 = vmatpush.msra.mxu0 0.0
    %1129 = vmatpush.msra.mxu0 0.0
    %1130 = vmatpush.msra.mxu0 0.0
    %1131 = vmatpush.msra.mxu0 0.0
    %1132 = vmatpush.msra.mxu0 0.0
    %1133 = vmatpush.msra.mxu0 0.0
    %1134 = vmatpush.msra.mxu0 0.0
    %1135 = vmatpush.msra.mxu0 0.0
    %1136 = vmatpush.msra.mxu0 0.0
    %1137 = vmatpush.msra.mxu0 0.0
    %1138 = vmatpush.msra.mxu0 0.0
    %1139 = vmatpush.msra.mxu0 0.0
    %1140 = vmatpush.msra.mxu0 %v1102
    %1141 = vmatpush.msra.mxu0 %v1101
    %1142 = vmatpush.msra.mxu0 %v1100
    %1143 = vmatpush.msra.mxu0 %v1099
    %1144 = vmatmul.f32.gmra.mxu0 %v1123
    %v1145 = vpop.f32.mrf.mxu0
    %v1146 = vadd.f32 %v1121, %v1145
    %1147 = vmatmul.f32.gmra.mxu0 %v1126
    %v1148 = vpop.f32.mrf.mxu0
    %v1149 = vadd.f32 %v1121, %v1148
    %1150 = vdwg.mxu0
    %v1151 = vperm.slane %v1116, 1
    %1152 = vmatpush.msra.mxu0 0.0
    %1153 = vmatpush.msra.mxu0 0.0
    %1154 = vmatpush.msra.mxu0 0.0
    %1155 = vmatpush.msra.mxu0 0.0
    %1156 = vmatpush.msra.mxu0 0.0
    %1157 = vmatpush.msra.mxu0 0.0
    %1158 = vmatpush.msra.mxu0 0.0
    %1159 = vmatpush.msra.mxu0 0.0
    %1160 = vmatpush.msra.mxu0 0.0
    %1161 = vmatpush.msra.mxu0 0.0
    %1162 = vmatpush.msra.mxu0 0.0
    %1163 = vmatpush.msra.mxu0 0.0
    %1164 = vmatpush.msra.mxu0 %v1106
    %1165 = vmatpush.msra.mxu0 %v1105
    %1166 = vmatpush.msra.mxu0 %v1104
    %1167 = vmatpush.msra.mxu0 %v1103
    %1168 = vmatmul.f32.gmra.mxu0 %v1123
    %v1169 = vpop.f32.mrf.mxu0
    %v1170 = vadd.f32 %v1151, %v1169
    %1171 = vmatmul.f32.gmra.mxu0 %v1126
    %v1172 = vpop.f32.mrf.mxu0
    %v1173 = vadd.f32 %v1151, %v1172
    %1174 = vdwg.mxu0
    %v1175 = vperm.slane %v1116, 2
    %1176 = vmatpush.msra.mxu0 0.0
    %1177 = vmatpush.msra.mxu0 0.0
    %1178 = vmatpush.msra.mxu0 0.0
    %1179 = vmatpush.msra.mxu0 0.0
    %1180 = vmatpush.msra.mxu0 0.0
    %1181 = vmatpush.msra.mxu0 0.0
    %1182 = vmatpush.msra.mxu0 0.0
    %1183 = vmatpush.msra.mxu0 0.0
    %1184 = vmatpush.msra.mxu0 0.0
    %1185 = vmatpush.msra.mxu0 0.0
    %1186 = vmatpush.msra.mxu0 0.0
    %1187 = vmatpush.msra.mxu0 0.0
    %1188 = vmatpush.msra.mxu0 %v1110
    %1189 = vmatpush.msra.mxu0 %v1109
    %1190 = vmatpush.msra.mxu0 %v1108
    %1191 = vmatpush.msra.mxu0 %v1107
    %1192 = vmatmul.f32.gmra.mxu0 %v1123
    %v1193 = vpop.f32.mrf.mxu0
    %v1194 = vadd.f32 %v1175, %v1193
    %1195 = vmatmul.f32.gmra.mxu0 %v1126
    %v1196 = vpop.f32.mrf.mxu0
    %v1197 = vadd.f32 %v1175, %v1196
    %1198 = vdwg.mxu0
    %1201 = vrot.lane.b32.xlu0 %v1146, 120
    %v1202 = vpop.permute.xlu0 %1201
    %1203 = vrot.lane.b32.xlu0 %v1149, 120
    %v1204 = vpop.permute.xlu0 %1203
    %1205 = vrot.lane.b32.xlu0 %v1146, 112
    %v1206 = vpop.permute.xlu0 %1205
    %1207 = vrot.lane.b32.xlu0 %v1149, 112
    %v1208 = vpop.permute.xlu0 %1207
    %1209 = vrot.lane.b32.xlu0 %v1146, 104
    %v1210 = vpop.permute.xlu0 %1209
    %1211 = vrot.lane.b32.xlu0 %v1149, 104
    %v1212 = vpop.permute.xlu0 %1211
    %1215 = vrot.lane.b32.xlu0 %v1170, 120
    %v1216 = vpop.permute.xlu0 %1215
    %1217 = vrot.lane.b32.xlu0 %v1173, 120
    %v1218 = vpop.permute.xlu0 %1217
    %1219 = vrot.lane.b32.xlu0 %v1170, 112
    %v1220 = vpop.permute.xlu0 %1219
    %1221 = vrot.lane.b32.xlu0 %v1173, 112
    %v1222 = vpop.permute.xlu0 %1221
    %1223 = vrot.lane.b32.xlu0 %v1170, 104
    %v1224 = vpop.permute.xlu0 %1223
    %1225 = vrot.lane.b32.xlu0 %v1173, 104
    %v1226 = vpop.permute.xlu0 %1225
    %1229 = vrot.lane.b32.xlu0 %v1194, 120
    %v1230 = vpop.permute.xlu0 %1229
    %1231 = vrot.lane.b32.xlu0 %v1197, 120
    %v1232 = vpop.permute.xlu0 %1231
    %1235 = vrot.lane.b32.xlu0 %v1194, 112
    %v1236 = vpop.permute.xlu0 %1235
    %1237 = vrot.lane.b32.xlu0 %v1197, 112
    %v1238 = vpop.permute.xlu0 %1237
    %1241 = vrot.lane.b32.xlu0 %v1194, 104
    %v1242 = vpop.permute.xlu0 %1241
    %1243 = vrot.lane.b32.xlu0 %v1197, 104
    %v1244 = vpop.permute.xlu0 %1243
    %v1247 = vsel %vm177, %v1146, 0
    %v1249 = vsel %vm177, %v1170, 0
    %1251 = vmatpush.xpose.msra.mxu0 0.0
    %1252 = vmatpush.xpose.msra.mxu0 0.0
    %1253 = vmatpush.xpose.msra.mxu0 0.0
    %1254 = vmatpush.xpose.msra.mxu0 0.0
    %1255 = vmatpush.xpose.msra.mxu0 0.0
    %1256 = vmatpush.xpose.msra.mxu0 0.0
    %1257 = vmatpush.xpose.msra.mxu0 0.0
    %1258 = vmatpush.xpose.msra.mxu0 0.0
    %1259 = vmatpush.xpose.msra.mxu0 0.0
    %1260 = vmatpush.xpose.msra.mxu0 0.0
    %1261 = vmatpush.xpose.msra.mxu0 0.0
    %1262 = vmatpush.xpose.msra.mxu0 0.0
    %1263 = vmatpush.xpose.msra.mxu0 0.0
    %1264 = vmatpush.xpose.msra.mxu0 0.0
    %1265 = vmatpush.xpose.msra.mxu0 0.0
    %1266 = vmatpush.xpose.msra.mxu0 %v1249
    %1267 = vmatmul.f32.gmra.mxu0 %v1247
    %v1268 = vpop.f32.mrf.mxu0
    %v1269 = vadd.f32 0.0, %v1268
    %1270 = vdwg.mxu0
    %v1271 = vsel %vm177, %v1149, 0
    %v1273 = vsel %vm177, %v1173, 0
    %1275 = vmatpush.xpose.msra.mxu0 0.0
    %1276 = vmatpush.xpose.msra.mxu0 0.0
    %1277 = vmatpush.xpose.msra.mxu0 0.0
    %1278 = vmatpush.xpose.msra.mxu0 0.0
    %1279 = vmatpush.xpose.msra.mxu0 0.0
    %1280 = vmatpush.xpose.msra.mxu0 0.0
    %1281 = vmatpush.xpose.msra.mxu0 0.0
    %1282 = vmatpush.xpose.msra.mxu0 0.0
    %1283 = vmatpush.xpose.msra.mxu0 0.0
    %1284 = vmatpush.xpose.msra.mxu0 0.0
    %1285 = vmatpush.xpose.msra.mxu0 0.0
    %1286 = vmatpush.xpose.msra.mxu0 0.0
    %1287 = vmatpush.xpose.msra.mxu0 0.0
    %1288 = vmatpush.xpose.msra.mxu0 0.0
    %1289 = vmatpush.xpose.msra.mxu0 0.0
    %1290 = vmatpush.xpose.msra.mxu0 %v1273
    %1291 = vmatmul.f32.gmra.mxu0 %v1271
    %v1292 = vpop.f32.mrf.mxu0
    %v1293 = vadd.f32 0.0, %v1292
    %1294 = vdwg.mxu0
    %v1295 = vsel %vm177, %v1202, 0
    %v1297 = vsel %vm177, %v1216, 0
    %1299 = vmatpush.xpose.msra.mxu0 0.0
    %1300 = vmatpush.xpose.msra.mxu0 0.0
    %1301 = vmatpush.xpose.msra.mxu0 0.0
    %1302 = vmatpush.xpose.msra.mxu0 0.0
    %1303 = vmatpush.xpose.msra.mxu0 0.0
    %1304 = vmatpush.xpose.msra.mxu0 0.0
    %1305 = vmatpush.xpose.msra.mxu0 0.0
    %1306 = vmatpush.xpose.msra.mxu0 0.0
    %1307 = vmatpush.xpose.msra.mxu0 0.0
    %1308 = vmatpush.xpose.msra.mxu0 0.0
    %1309 = vmatpush.xpose.msra.mxu0 0.0
    %1310 = vmatpush.xpose.msra.mxu0 0.0
    %1311 = vmatpush.xpose.msra.mxu0 0.0
    %1312 = vmatpush.xpose.msra.mxu0 0.0
    %1313 = vmatpush.xpose.msra.mxu0 0.0
    %1314 = vmatpush.xpose.msra.mxu0 %v1297
    %1315 = vmatmul.f32.gmra.mxu0 %v1295
    %v1316 = vpop.f32.mrf.mxu0
    %v1317 = vadd.f32 0.0, %v1316
    %1318 = vdwg.mxu0
    %v1319 = vsel %vm177, %v1204, 0
    %v1321 = vsel %vm177, %v1218, 0
    %1323 = vmatpush.xpose.msra.mxu0 0.0
    %1324 = vmatpush.xpose.msra.mxu0 0.0
    %1325 = vmatpush.xpose.msra.mxu0 0.0
    %1326 = vmatpush.xpose.msra.mxu0 0.0
    %1327 = vmatpush.xpose.msra.mxu0 0.0
    %1328 = vmatpush.xpose.msra.mxu0 0.0
    %1329 = vmatpush.xpose.msra.mxu0 0.0
    %1330 = vmatpush.xpose.msra.mxu0 0.0
    %1331 = vmatpush.xpose.msra.mxu0 0.0
    %1332 = vmatpush.xpose.msra.mxu0 0.0
    %1333 = vmatpush.xpose.msra.mxu0 0.0
    %1334 = vmatpush.xpose.msra.mxu0 0.0
    %1335 = vmatpush.xpose.msra.mxu0 0.0
    %1336 = vmatpush.xpose.msra.mxu0 0.0
    %1337 = vmatpush.xpose.msra.mxu0 0.0
    %1338 = vmatpush.xpose.msra.mxu0 %v1321
    %1339 = vmatmul.f32.gmra.mxu0 %v1319
    %v1340 = vpop.f32.mrf.mxu0
    %v1341 = vadd.f32 0.0, %v1340
    %1342 = vdwg.mxu0
    %v1343 = vsel %vm177, %v1206, 0
    %v1345 = vsel %vm177, %v1220, 0
    %1347 = vmatpush.xpose.msra.mxu0 0.0
    %1348 = vmatpush.xpose.msra.mxu0 0.0
    %1349 = vmatpush.xpose.msra.mxu0 0.0
    %1350 = vmatpush.xpose.msra.mxu0 0.0
    %1351 = vmatpush.xpose.msra.mxu0 0.0
    %1352 = vmatpush.xpose.msra.mxu0 0.0
    %1353 = vmatpush.xpose.msra.mxu0 0.0
    %1354 = vmatpush.xpose.msra.mxu0 0.0
    %1355 = vmatpush.xpose.msra.mxu0 0.0
    %1356 = vmatpush.xpose.msra.mxu0 0.0
    %1357 = vmatpush.xpose.msra.mxu0 0.0
    %1358 = vmatpush.xpose.msra.mxu0 0.0
    %1359 = vmatpush.xpose.msra.mxu0 0.0
    %1360 = vmatpush.xpose.msra.mxu0 0.0
    %1361 = vmatpush.xpose.msra.mxu0 0.0
    %1362 = vmatpush.xpose.msra.mxu0 %v1345
    %1363 = vmatmul.f32.gmra.mxu0 %v1343
    %v1364 = vpop.f32.mrf.mxu0
    %v1365 = vadd.f32 0.0, %v1364
    %1366 = vdwg.mxu0
    %v1367 = vsel %vm177, %v1208, 0
    %v1369 = vsel %vm177, %v1222, 0
    %1371 = vmatpush.xpose.msra.mxu0 0.0
    %1372 = vmatpush.xpose.msra.mxu0 0.0
    %1373 = vmatpush.xpose.msra.mxu0 0.0
    %1374 = vmatpush.xpose.msra.mxu0 0.0
    %1375 = vmatpush.xpose.msra.mxu0 0.0
    %1376 = vmatpush.xpose.msra.mxu0 0.0
    %1377 = vmatpush.xpose.msra.mxu0 0.0
    %1378 = vmatpush.xpose.msra.mxu0 0.0
    %1379 = vmatpush.xpose.msra.mxu0 0.0
    %1380 = vmatpush.xpose.msra.mxu0 0.0
    %1381 = vmatpush.xpose.msra.mxu0 0.0
    %1382 = vmatpush.xpose.msra.mxu0 0.0
    %1383 = vmatpush.xpose.msra.mxu0 0.0
    %1384 = vmatpush.xpose.msra.mxu0 0.0
    %1385 = vmatpush.xpose.msra.mxu0 0.0
    %1386 = vmatpush.xpose.msra.mxu0 %v1369
    %1387 = vmatmul.f32.gmra.mxu0 %v1367
    %v1388 = vpop.f32.mrf.mxu0
    %v1389 = vadd.f32 0.0, %v1388
    %1390 = vdwg.mxu0
    %v1391 = vsel %vm177, %v1210, 0
    %v1393 = vsel %vm177, %v1224, 0
    %1395 = vmatpush.xpose.msra.mxu0 0.0
    %1396 = vmatpush.xpose.msra.mxu0 0.0
    %1397 = vmatpush.xpose.msra.mxu0 0.0
    %1398 = vmatpush.xpose.msra.mxu0 0.0
    %1399 = vmatpush.xpose.msra.mxu0 0.0
    %1400 = vmatpush.xpose.msra.mxu0 0.0
    %1401 = vmatpush.xpose.msra.mxu0 0.0
    %1402 = vmatpush.xpose.msra.mxu0 0.0
    %1403 = vmatpush.xpose.msra.mxu0 0.0
    %1404 = vmatpush.xpose.msra.mxu0 0.0
    %1405 = vmatpush.xpose.msra.mxu0 0.0
    %1406 = vmatpush.xpose.msra.mxu0 0.0
    %1407 = vmatpush.xpose.msra.mxu0 0.0
    %1408 = vmatpush.xpose.msra.mxu0 0.0
    %1409 = vmatpush.xpose.msra.mxu0 0.0
    %1410 = vmatpush.xpose.msra.mxu0 %v1393
    %1411 = vmatmul.f32.gmra.mxu0 %v1391
    %v1412 = vpop.f32.mrf.mxu0
    %v1413 = vadd.f32 0.0, %v1412
    %1414 = vdwg.mxu0
    %v1415 = vsel %vm177, %v1212, 0
    %v1417 = vsel %vm177, %v1226, 0
    %1419 = vmatpush.xpose.msra.mxu0 0.0
    %1420 = vmatpush.xpose.msra.mxu0 0.0
    %1421 = vmatpush.xpose.msra.mxu0 0.0
    %1422 = vmatpush.xpose.msra.mxu0 0.0
    %1423 = vmatpush.xpose.msra.mxu0 0.0
    %1424 = vmatpush.xpose.msra.mxu0 0.0
    %1425 = vmatpush.xpose.msra.mxu0 0.0
    %1426 = vmatpush.xpose.msra.mxu0 0.0
    %1427 = vmatpush.xpose.msra.mxu0 0.0
    %1428 = vmatpush.xpose.msra.mxu0 0.0
    %1429 = vmatpush.xpose.msra.mxu0 0.0
    %1430 = vmatpush.xpose.msra.mxu0 0.0
    %1431 = vmatpush.xpose.msra.mxu0 0.0
    %1432 = vmatpush.xpose.msra.mxu0 0.0
    %1433 = vmatpush.xpose.msra.mxu0 0.0
    %1434 = vmatpush.xpose.msra.mxu0 %v1417
    %1435 = vmatmul.f32.gmra.mxu0 %v1415
    %v1436 = vpop.f32.mrf.mxu0
    %v1437 = vadd.f32 0.0, %v1436
    %1438 = vdwg.mxu0
    %v1439 = vsel %vm177, %v1269, -inf
    %1440 = vmax.xlane.f32.xlu0 %v1439
    %v1441 = vpop.xlane.xlu0 %1440
    %v1442 = vsel %vm177, %v1293, -inf
    %1443 = vmax.xlane.f32.xlu0 %v1442
    %v1444 = vpop.xlane.xlu0 %1443
    %v1445 = vsel %vm177, %v1317, -inf
    %1446 = vmax.xlane.f32.xlu0 %v1445
    %v1447 = vpop.xlane.xlu0 %1446
    %v1448 = vsel %vm177, %v1341, -inf
    %1449 = vmax.xlane.f32.xlu0 %v1448
    %v1450 = vpop.xlane.xlu0 %1449
    %v1451 = vsel %vm177, %v1365, -inf
    %1452 = vmax.xlane.f32.xlu0 %v1451
    %v1453 = vpop.xlane.xlu0 %1452
    %v1454 = vsel %vm177, %v1389, -inf
    %1455 = vmax.xlane.f32.xlu0 %v1454
    %v1456 = vpop.xlane.xlu0 %1455
    %v1457 = vsel %vm177, %v1413, -inf
    %1458 = vmax.xlane.f32.xlu0 %v1457
    %v1459 = vpop.xlane.xlu0 %1458
    %v1460 = vsel %vm177, %v1437, -inf
    %1461 = vmax.xlane.f32.xlu0 %v1460
    %v1462 = vpop.xlane.xlu0 %1461
    %v1463 = vsub.f32 %v1269, %v1441
    %v1464 = vsub.f32 %v1293, %v1444
    %v1465 = vsub.f32 %v1317, %v1447
    %v1466 = vsub.f32 %v1341, %v1450
    %v1467 = vsub.f32 %v1365, %v1453
    %v1468 = vsub.f32 %v1389, %v1456
    %v1469 = vsub.f32 %v1413, %v1459
    %v1470 = vsub.f32 %v1437, %v1462
    %v1471 = vmul.f32 %v1463, 1.442695
    %v1472 = vpow.pop %v1471
    %v1473 = vmul.f32 %v1464, 1.442695
    %v1474 = vpow.pop %v1473
    %v1475 = vmul.f32 %v1465, 1.442695
    %v1476 = vpow.pop %v1475
    %v1477 = vmul.f32 %v1466, 1.442695
    %v1478 = vpow.pop %v1477
    %v1479 = vmul.f32 %v1467, 1.442695
    %v1480 = vpow.pop %v1479
    %v1481 = vmul.f32 %v1468, 1.442695
    %v1482 = vpow.pop %v1481
    %v1483 = vmul.f32 %v1469, 1.442695
    %v1484 = vpow.pop %v1483
    %v1485 = vmul.f32 %v1470, 1.442695
    %v1486 = vpow.pop %v1485
    %v1487 = vsel %vm177, %v1472, 0.0
    %1488 = vadd.xlane.f32.xlu0 %v1487
    %v1489 = vpop.xlane.xlu0 %1488
    %v1490 = vsel %vm177, %v1474, 0.0
    %1491 = vadd.xlane.f32.xlu0 %v1490
    %v1492 = vpop.xlane.xlu0 %1491
    %v1493 = vsel %vm177, %v1476, 0.0
    %1494 = vadd.xlane.f32.xlu0 %v1493
    %v1495 = vpop.xlane.xlu0 %1494
    %v1496 = vsel %vm177, %v1478, 0.0
    %1497 = vadd.xlane.f32.xlu0 %v1496
    %v1498 = vpop.xlane.xlu0 %1497
    %v1499 = vsel %vm177, %v1480, 0.0
    %1500 = vadd.xlane.f32.xlu0 %v1499
    %v1501 = vpop.xlane.xlu0 %1500
    %v1502 = vsel %vm177, %v1482, 0.0
    %1503 = vadd.xlane.f32.xlu0 %v1502
    %v1504 = vpop.xlane.xlu0 %1503
    %v1505 = vsel %vm177, %v1484, 0.0
    %1506 = vadd.xlane.f32.xlu0 %v1505
    %v1507 = vpop.xlane.xlu0 %1506
    %v1508 = vsel %vm177, %v1486, 0.0
    %1509 = vadd.xlane.f32.xlu0 %v1508
    %v1510 = vpop.xlane.xlu0 %1509
    %v1511 = vrcp.pop %v1489
    %v1512 = vrcp.pop %v1492
    %v1513 = vrcp.pop %v1495
    %v1514 = vrcp.pop %v1498
    %v1515 = vrcp.pop %v1501
    %v1516 = vrcp.pop %v1504
    %v1517 = vrcp.pop %v1507
    %v1518 = vrcp.pop %v1510
    %v1519 = vmul.f32 %v1472, %v1511
    %v1520 = vmul.f32 %v1474, %v1512
    %v1521 = vmul.f32 %v1476, %v1513
    %v1522 = vmul.f32 %v1478, %v1514
    %v1523 = vmul.f32 %v1480, %v1515
    %v1524 = vmul.f32 %v1482, %v1516
    %v1525 = vmul.f32 %v1484, %v1517
    %v1526 = vmul.f32 %v1486, %v1518
    %v1528 = vsel %vm177, %v1519, 0
    %1530 = vmatpush.msra.mxu0 0.0
    %1531 = vmatpush.msra.mxu0 0.0
    %1532 = vmatpush.msra.mxu0 0.0
    %1533 = vmatpush.msra.mxu0 0.0
    %1534 = vmatpush.msra.mxu0 0.0
    %1535 = vmatpush.msra.mxu0 0.0
    %1536 = vmatpush.msra.mxu0 0.0
    %1537 = vmatpush.msra.mxu0 0.0
    %1538 = vmatpush.msra.mxu0 0.0
    %1539 = vmatpush.msra.mxu0 0.0
    %1540 = vmatpush.msra.mxu0 0.0
    %1541 = vmatpush.msra.mxu0 0.0
    %1542 = vmatpush.msra.mxu0 0.0
    %1543 = vmatpush.msra.mxu0 0.0
    %1544 = vmatpush.msra.mxu0 0.0
    %1545 = vmatpush.msra.mxu0 %v1194
    %1546 = vmatmul.f32.gmra.mxu0 %v1528
    %v1547 = vpop.f32.mrf.mxu0
    %v1548 = vadd.f32 0.0, %v1547
    %1549 = vdwg.mxu0
    %v1551 = vsel %vm177, %v1520, 0
    %1553 = vmatpush.msra.mxu0 0.0
    %1554 = vmatpush.msra.mxu0 0.0
    %1555 = vmatpush.msra.mxu0 0.0
    %1556 = vmatpush.msra.mxu0 0.0
    %1557 = vmatpush.msra.mxu0 0.0
    %1558 = vmatpush.msra.mxu0 0.0
    %1559 = vmatpush.msra.mxu0 0.0
    %1560 = vmatpush.msra.mxu0 0.0
    %1561 = vmatpush.msra.mxu0 0.0
    %1562 = vmatpush.msra.mxu0 0.0
    %1563 = vmatpush.msra.mxu0 0.0
    %1564 = vmatpush.msra.mxu0 0.0
    %1565 = vmatpush.msra.mxu0 0.0
    %1566 = vmatpush.msra.mxu0 0.0
    %1567 = vmatpush.msra.mxu0 0.0
    %1568 = vmatpush.msra.mxu0 %v1197
    %1569 = vmatmul.f32.gmra.mxu0 %v1551
    %v1570 = vpop.f32.mrf.mxu0
    %v1571 = vadd.f32 0.0, %v1570
    %1572 = vdwg.mxu0
    %v1574 = vsel %vm177, %v1521, 0
    %1576 = vmatpush.msra.mxu0 0.0
    %1577 = vmatpush.msra.mxu0 0.0
    %1578 = vmatpush.msra.mxu0 0.0
    %1579 = vmatpush.msra.mxu0 0.0
    %1580 = vmatpush.msra.mxu0 0.0
    %1581 = vmatpush.msra.mxu0 0.0
    %1582 = vmatpush.msra.mxu0 0.0
    %1583 = vmatpush.msra.mxu0 0.0
    %1584 = vmatpush.msra.mxu0 0.0
    %1585 = vmatpush.msra.mxu0 0.0
    %1586 = vmatpush.msra.mxu0 0.0
    %1587 = vmatpush.msra.mxu0 0.0
    %1588 = vmatpush.msra.mxu0 0.0
    %1589 = vmatpush.msra.mxu0 0.0
    %1590 = vmatpush.msra.mxu0 0.0
    %1591 = vmatpush.msra.mxu0 %v1230
    %1592 = vmatmul.f32.gmra.mxu0 %v1574
    %v1593 = vpop.f32.mrf.mxu0
    %v1594 = vadd.f32 0.0, %v1593
    %1595 = vdwg.mxu0
    %v1597 = vsel %vm177, %v1522, 0
    %1599 = vmatpush.msra.mxu0 0.0
    %1600 = vmatpush.msra.mxu0 0.0
    %1601 = vmatpush.msra.mxu0 0.0
    %1602 = vmatpush.msra.mxu0 0.0
    %1603 = vmatpush.msra.mxu0 0.0
    %1604 = vmatpush.msra.mxu0 0.0
    %1605 = vmatpush.msra.mxu0 0.0
    %1606 = vmatpush.msra.mxu0 0.0
    %1607 = vmatpush.msra.mxu0 0.0
    %1608 = vmatpush.msra.mxu0 0.0
    %1609 = vmatpush.msra.mxu0 0.0
    %1610 = vmatpush.msra.mxu0 0.0
    %1611 = vmatpush.msra.mxu0 0.0
    %1612 = vmatpush.msra.mxu0 0.0
    %1613 = vmatpush.msra.mxu0 0.0
    %1614 = vmatpush.msra.mxu0 %v1232
    %1615 = vmatmul.f32.gmra.mxu0 %v1597
    %v1616 = vpop.f32.mrf.mxu0
    %v1617 = vadd.f32 0.0, %v1616
    %1618 = vdwg.mxu0
    %v1620 = vsel %vm177, %v1523, 0
    %1622 = vmatpush.msra.mxu0 0.0
    %1623 = vmatpush.msra.mxu0 0.0
    %1624 = vmatpush.msra.mxu0 0.0
    %1625 = vmatpush.msra.mxu0 0.0
    %1626 = vmatpush.msra.mxu0 0.0
    %1627 = vmatpush.msra.mxu0 0.0
    %1628 = vmatpush.msra.mxu0 0.0
    %1629 = vmatpush.msra.mxu0 0.0
    %1630 = vmatpush.msra.mxu0 0.0
    %1631 = vmatpush.msra.mxu0 0.0
    %1632 = vmatpush.msra.mxu0 0.0
    %1633 = vmatpush.msra.mxu0 0.0
    %1634 = vmatpush.msra.mxu0 0.0
    %1635 = vmatpush.msra.mxu0 0.0
    %1636 = vmatpush.msra.mxu0 0.0
    %1637 = vmatpush.msra.mxu0 %v1236
    %1638 = vmatmul.f32.gmra.mxu0 %v1620
    %v1639 = vpop.f32.mrf.mxu0
    %v1640 = vadd.f32 0.0, %v1639
    %1641 = vdwg.mxu0
    %v1643 = vsel %vm177, %v1524, 0
    %1645 = vmatpush.msra.mxu0 0.0
    %1646 = vmatpush.msra.mxu0 0.0
    %1647 = vmatpush.msra.mxu0 0.0
    %1648 = vmatpush.msra.mxu0 0.0
    %1649 = vmatpush.msra.mxu0 0.0
    %1650 = vmatpush.msra.mxu0 0.0
    %1651 = vmatpush.msra.mxu0 0.0
    %1652 = vmatpush.msra.mxu0 0.0
    %1653 = vmatpush.msra.mxu0 0.0
    %1654 = vmatpush.msra.mxu0 0.0
    %1655 = vmatpush.msra.mxu0 0.0
    %1656 = vmatpush.msra.mxu0 0.0
    %1657 = vmatpush.msra.mxu0 0.0
    %1658 = vmatpush.msra.mxu0 0.0
    %1659 = vmatpush.msra.mxu0 0.0
    %1660 = vmatpush.msra.mxu0 %v1238
    %1661 = vmatmul.f32.gmra.mxu0 %v1643
    %v1662 = vpop.f32.mrf.mxu0
    %v1663 = vadd.f32 0.0, %v1662
    %1664 = vdwg.mxu0
    %v1666 = vsel %vm177, %v1525, 0
    %1668 = vmatpush.msra.mxu0 0.0
    %1669 = vmatpush.msra.mxu0 0.0
    %1670 = vmatpush.msra.mxu0 0.0
    %1671 = vmatpush.msra.mxu0 0.0
    %1672 = vmatpush.msra.mxu0 0.0
    %1673 = vmatpush.msra.mxu0 0.0
    %1674 = vmatpush.msra.mxu0 0.0
    %1675 = vmatpush.msra.mxu0 0.0
    %1676 = vmatpush.msra.mxu0 0.0
    %1677 = vmatpush.msra.mxu0 0.0
    %1678 = vmatpush.msra.mxu0 0.0
    %1679 = vmatpush.msra.mxu0 0.0
    %1680 = vmatpush.msra.mxu0 0.0
    %1681 = vmatpush.msra.mxu0 0.0
    %1682 = vmatpush.msra.mxu0 0.0
    %1683 = vmatpush.msra.mxu0 %v1242
    %1684 = vmatmul.f32.gmra.mxu0 %v1666
    %v1685 = vpop.f32.mrf.mxu0
    %v1686 = vadd.f32 0.0, %v1685
    %1687 = vdwg.mxu0
    %v1689 = vsel %vm177, %v1526, 0
    %1691 = vmatpush.msra.mxu0 0.0
    %1692 = vmatpush.msra.mxu0 0.0
    %1693 = vmatpush.msra.mxu0 0.0
    %1694 = vmatpush.msra.mxu0 0.0
    %1695 = vmatpush.msra.mxu0 0.0
    %1696 = vmatpush.msra.mxu0 0.0
    %1697 = vmatpush.msra.mxu0 0.0
    %1698 = vmatpush.msra.mxu0 0.0
    %1699 = vmatpush.msra.mxu0 0.0
    %1700 = vmatpush.msra.mxu0 0.0
    %1701 = vmatpush.msra.mxu0 0.0
    %1702 = vmatpush.msra.mxu0 0.0
    %1703 = vmatpush.msra.mxu0 0.0
    %1704 = vmatpush.msra.mxu0 0.0
    %1705 = vmatpush.msra.mxu0 0.0
    %1706 = vmatpush.msra.mxu0 %v1244
    %1707 = vmatmul.f32.gmra.mxu0 %v1689
    %v1708 = vpop.f32.mrf.mxu0
    %v1709 = vadd.f32 0.0, %v1708
    %1710 = vdwg.mxu0
    %1713 = vrot.lane.b32.xlu0 %v1594, 8
    %v1714 = vpop.permute.xlu0 %1713
    %1715 = vrot.lane.b32.xlu0 %v1617, 8
    %v1716 = vpop.permute.xlu0 %1715
    %1721 = vrot.lane.b32.xlu0 %v1640, 16
    %v1722 = vpop.permute.xlu0 %1721
    %1723 = vrot.lane.b32.xlu0 %v1663, 16
    %v1724 = vpop.permute.xlu0 %1723
    %1729 = vrot.lane.b32.xlu0 %v1686, 24
    %v1730 = vpop.permute.xlu0 %1729
    %1731 = vrot.lane.b32.xlu0 %v1709, 24
    %v1732 = vpop.permute.xlu0 %1731
    %v1735 = vsel %vm177, %v1548, %v1714
    %v1736 = vsel %vm177, %v1571, %v1716
    %v1737 = vsel %vm668, %v1735, %v1722
    %v1738 = vsel %vm668, %v1736, %v1724
    %v1739 = vsel %vm671, %v1737, %v1730
    %v1740 = vsel %vm671, %v1738, %v1732
    %v1741 = vperm.slane %v1116, 3
    %v1743 = vsel %vm51, %v1739, 0
    %v1746 = vsel %vm51, %v1740, 0
    %1748 = vmatpush.msra.mxu0 0.0
    %1749 = vmatpush.msra.mxu0 0.0
    %1750 = vmatpush.msra.mxu0 0.0
    %1751 = vmatpush.msra.mxu0 0.0
    %1752 = vmatpush.msra.mxu0 0.0
    %1753 = vmatpush.msra.mxu0 0.0
    %1754 = vmatpush.msra.mxu0 0.0
    %1755 = vmatpush.msra.mxu0 0.0
    %1756 = vmatpush.msra.mxu0 0.0
    %1757 = vmatpush.msra.mxu0 0.0
    %1758 = vmatpush.msra.mxu0 0.0
    %1759 = vmatpush.msra.mxu0 0.0
    %1760 = vmatpush.msra.mxu0 %v1114
    %1761 = vmatpush.msra.mxu0 %v1113
    %1762 = vmatpush.msra.mxu0 %v1112
    %1763 = vmatpush.msra.mxu0 %v1111
    %1764 = vmatmul.f32.gmra.mxu0 %v1743
    %v1765 = vpop.f32.mrf.mxu0
    %v1766 = vadd.f32 %v1741, %v1765
    %1767 = vmatmul.f32.gmra.mxu0 %v1746
    %v1768 = vpop.f32.mrf.mxu0
    %v1769 = vadd.f32 %v1741, %v1768
    %1770 = vdwg.mxu0
    %v1771 = vadd.f32 %v1096, %v1766
    %v1772 = vadd.f32 %v1097, %v1769
    %v1773 = vsel %vm51, %v1771, 0.0
    %1774 = vadd.xlane.f32.xlu0 %v1773
    %v1775 = vpop.xlane.xlu0 %1774
    %v1776 = vsel %vm51, %v1772, 0.0
    %1777 = vadd.xlane.f32.xlu0 %v1776
    %v1778 = vpop.xlane.xlu0 %1777
    %v1779 = vmul.f32 %v1775, %v718
    %v1780 = vmul.f32 %v1778, %v718
    %v1781 = vsub.f32 %v1771, %v1779
    %v1782 = vsub.f32 %v1772, %v1780
    %v1783 = vmul.f32 %v1781, %v1781
    %v1784 = vmul.f32 %v1782, %v1782
    %v1785 = vsel %vm51, %v1783, 0.0
    %1786 = vadd.xlane.f32.xlu0 %v1785
    %v1787 = vpop.xlane.xlu0 %1786
    %v1788 = vsel %vm51, %v1784, 0.0
    %1789 = vadd.xlane.f32.xlu0 %v1788
    %v1790 = vpop.xlane.xlu0 %1789
    %v1791 = vmul.f32 %v1787, %v718
    %v1792 = vmul.f32 %v1790, %v718
    %v1793 = vadd.f32 %v1791, 1e-05
    %v1794 = vadd.f32 %v1792, 1e-05
    %v1795 = vrsqrt.pop %v1793
    %v1796 = vmul.f32 %v1795, %v1793
    %v1797 = vmul.f32 %v1796, %v1795
    %v1798 = vmul.f32 0.5, %v1797
    %v1799 = vsub.f32 1.5, %v1798
    %v1800 = vmul.f32 %v1795, %v1799
    %vm1801 = vweird.f32 %v1793
    %vm1802 = vweird.f32 %v1795
    %vm1803 = vmor %vm1801, %vm1802
    %v1804 = vsel %vm1803, %v1795, %v1800
    %v1805 = vrsqrt.pop %v1794
    %v1806 = vmul.f32 %v1805, %v1794
    %v1807 = vmul.f32 %v1806, %v1805
    %v1808 = vmul.f32 0.5, %v1807
    %v1809 = vsub.f32 1.5, %v1808
    %v1810 = vmul.f32 %v1805, %v1809
    %vm1811 = vweird.f32 %v1794
    %vm1812 = vweird.f32 %v1805
    %vm1813 = vmor %vm1811, %vm1812
    %v1814 = vsel %vm1813, %v1805, %v1810
    %v1815 = vmul.f32 %v1781, %v1804
    %v1816 = vmul.f32 %v1782, %v1814
    %v1817 = vperm.slane %v1116, 4
    %v1818 = vmul.f32 %v1815, %v1817
    %v1819 = vmul.f32 %v1816, %v1817
    %v1820 = vperm.slane %v1116, 5
    %v1821 = vadd.f32 %v1818, %v1820
    %v1822 = vadd.f32 %v1819, %v1820
    %s1823 = scalar_lea.vmem %s2, 128
    %v1824 = vld [vmem:[%s1823] sm:$0xff]
    %v1825 = vld [vmem:[%s1823 + $0x8] sm:$0xff]
    %v1826 = vld [vmem:[%s1823 + $0x10] sm:$0xff]
    %v1827 = vld [vmem:[%s1823 + $0x18] sm:$0xff]
    %v1828 = vld [vmem:[%s1823 + $0x20] sm:$0xff]
    %v1829 = vld [vmem:[%s1823 + $0x28] sm:$0xff]
    %v1830 = vld [vmem:[%s1823 + $0x30] sm:$0xff]
    %v1831 = vld [vmem:[%s1823 + $0x38] sm:$0xff]
    %v1832 = vld [vmem:[%s1823 + $0x40] sm:$0xff]
    %v1833 = vld [vmem:[%s1823 + $0x48] sm:$0xff]
    %v1834 = vld [vmem:[%s1823 + $0x50] sm:$0xff]
    %v1835 = vld [vmem:[%s1823 + $0x58] sm:$0xff]
    %v1836 = vld [vmem:[%s1823 + $0x60] sm:$0xff]
    %v1837 = vld [vmem:[%s1823 + $0x68] sm:$0xff]
    %v1838 = vld [vmem:[%s1823 + $0x70] sm:$0xff]
    %v1839 = vld [vmem:[%s1823 + $0x78] sm:$0xff]
    %v1840 = vperm.slane %v1117, 1
    %v1841 = vperm.slane %v1118, 1
    %v1842 = vperm.slane %v1119, 1
    %v1843 = vperm.slane %v1120, 1
    %v1845 = vsel %vm51, %v1821, 0
    %v1848 = vsel %vm51, %v1822, 0
    %1850 = vmatpush.msra.mxu0 0.0
    %1851 = vmatpush.msra.mxu0 0.0
    %1852 = vmatpush.msra.mxu0 0.0
    %1853 = vmatpush.msra.mxu0 0.0
    %1854 = vmatpush.msra.mxu0 0.0
    %1855 = vmatpush.msra.mxu0 0.0
    %1856 = vmatpush.msra.mxu0 0.0
    %1857 = vmatpush.msra.mxu0 0.0
    %1858 = vmatpush.msra.mxu0 0.0
    %1859 = vmatpush.msra.mxu0 0.0
    %1860 = vmatpush.msra.mxu0 0.0
    %1861 = vmatpush.msra.mxu0 0.0
    %1862 = vmatpush.msra.mxu0 %v1836
    %1863 = vmatpush.msra.mxu0 %v1832
    %1864 = vmatpush.msra.mxu0 %v1828
    %1865 = vmatpush.msra.mxu0 %v1824
    %1866 = vmatmul.f32.gmra.mxu0 %v1845
    %v1867 = vpop.f32.mrf.mxu0
    %v1868 = vadd.f32 %v1840, %v1867
    %1869 = vmatmul.f32.gmra.mxu0 %v1848
    %v1870 = vpop.f32.mrf.mxu0
    %v1871 = vadd.f32 %v1840, %v1870
    %1872 = vdwg.mxu0
    %1873 = vmatpush.msra.mxu0 0.0
    %1874 = vmatpush.msra.mxu0 0.0
    %1875 = vmatpush.msra.mxu0 0.0
    %1876 = vmatpush.msra.mxu0 0.0
    %1877 = vmatpush.msra.mxu0 0.0
    %1878 = vmatpush.msra.mxu0 0.0
    %1879 = vmatpush.msra.mxu0 0.0
    %1880 = vmatpush.msra.mxu0 0.0
    %1881 = vmatpush.msra.mxu0 0.0
    %1882 = vmatpush.msra.mxu0 0.0
    %1883 = vmatpush.msra.mxu0 0.0
    %1884 = vmatpush.msra.mxu0 0.0
    %1885 = vmatpush.msra.mxu0 %v1837
    %1886 = vmatpush.msra.mxu0 %v1833
    %1887 = vmatpush.msra.mxu0 %v1829
    %1888 = vmatpush.msra.mxu0 %v1825
    %1889 = vmatmul.f32.gmra.mxu0 %v1845
    %v1890 = vpop.f32.mrf.mxu0
    %v1891 = vadd.f32 %v1841, %v1890
    %1892 = vmatmul.f32.gmra.mxu0 %v1848
    %v1893 = vpop.f32.mrf.mxu0
    %v1894 = vadd.f32 %v1841, %v1893
    %1895 = vdwg.mxu0
    %1896 = vmatpush.msra.mxu0 0.0
    %1897 = vmatpush.msra.mxu0 0.0
    %1898 = vmatpush.msra.mxu0 0.0
    %1899 = vmatpush.msra.mxu0 0.0
    %1900 = vmatpush.msra.mxu0 0.0
    %1901 = vmatpush.msra.mxu0 0.0
    %1902 = vmatpush.msra.mxu0 0.0
    %1903 = vmatpush.msra.mxu0 0.0
    %1904 = vmatpush.msra.mxu0 0.0
    %1905 = vmatpush.msra.mxu0 0.0
    %1906 = vmatpush.msra.mxu0 0.0
    %1907 = vmatpush.msra.mxu0 0.0
    %1908 = vmatpush.msra.mxu0 %v1838
    %1909 = vmatpush.msra.mxu0 %v1834
    %1910 = vmatpush.msra.mxu0 %v1830
    %1911 = vmatpush.msra.mxu0 %v1826
    %1912 = vmatmul.f32.gmra.mxu0 %v1845
    %v1913 = vpop.f32.mrf.mxu0
    %v1914 = vadd.f32 %v1842, %v1913
    %1915 = vmatmul.f32.gmra.mxu0 %v1848
    %v1916 = vpop.f32.mrf.mxu0
    %v1917 = vadd.f32 %v1842, %v1916
    %1918 = vdwg.mxu0
    %1919 = vmatpush.msra.mxu0 0.0
    %1920 = vmatpush.msra.mxu0 0.0
    %1921 = vmatpush.msra.mxu0 0.0
    %1922 = vmatpush.msra.mxu0 0.0
    %1923 = vmatpush.msra.mxu0 0.0
    %1924 = vmatpush.msra.mxu0 0.0
    %1925 = vmatpush.msra.mxu0 0.0
    %1926 = vmatpush.msra.mxu0 0.0
    %1927 = vmatpush.msra.mxu0 0.0
    %1928 = vmatpush.msra.mxu0 0.0
    %1929 = vmatpush.msra.mxu0 0.0
    %1930 = vmatpush.msra.mxu0 0.0
    %1931 = vmatpush.msra.mxu0 %v1839
    %1932 = vmatpush.msra.mxu0 %v1835
    %1933 = vmatpush.msra.mxu0 %v1831
    %1934 = vmatpush.msra.mxu0 %v1827
    %1935 = vmatmul.f32.gmra.mxu0 %v1845
    %v1936 = vpop.f32.mrf.mxu0
    %v1937 = vadd.f32 %v1843, %v1936
    %1938 = vmatmul.f32.gmra.mxu0 %v1848
    %v1939 = vpop.f32.mrf.mxu0
    %v1940 = vadd.f32 %v1843, %v1939
    %1941 = vdwg.mxu0
    %v1942 = vmax.f32 %v1868, 0.0
    %v1943 = vmax.f32 %v1891, 0.0
    %v1944 = vmax.f32 %v1914, 0.0
    %v1945 = vmax.f32 %v1937, 0.0
    %v1946 = vmax.f32 %v1871, 0.0
    %v1947 = vmax.f32 %v1894, 0.0
    %v1948 = vmax.f32 %v1917, 0.0
    %v1949 = vmax.f32 %v1940, 0.0
    %s1950 = scalar_lea.vmem %s3, 512
    %v1951 = vld [vmem:[%s1950] sm:$0xff]
    %v1952 = vld [vmem:[%s1950 + $0x8] sm:$0xff]
    %v1953 = vld [vmem:[%s1950 + $0x10] sm:$0xff]
    %v1954 = vld [vmem:[%s1950 + $0x18] sm:$0xff]
    %v1955 = vld [vmem:[%s1950 + $0x20] sm:$0xff]
    %v1956 = vld [vmem:[%s1950 + $0x28] sm:$0xff]
    %v1957 = vld [vmem:[%s1950 + $0x30] sm:$0xff]
    %v1958 = vld [vmem:[%s1950 + $0x38] sm:$0xff]
    %v1959 = vld [vmem:[%s1950 + $0x40] sm:$0xff]
    %v1960 = vld [vmem:[%s1950 + $0x48] sm:$0xff]
    %v1961 = vld [vmem:[%s1950 + $0x50] sm:$0xff]
    %v1962 = vld [vmem:[%s1950 + $0x58] sm:$0xff]
    %v1963 = vld [vmem:[%s1950 + $0x60] sm:$0xff]
    %v1964 = vld [vmem:[%s1950 + $0x68] sm:$0xff]
    %v1965 = vld [vmem:[%s1950 + $0x70] sm:$0xff]
    %v1966 = vld [vmem:[%s1950 + $0x78] sm:$0xff]
    %v1967 = vld [vmem:[%s1950 + $0x80] sm:$0xff]
    %v1968 = vld [vmem:[%s1950 + $0x88] sm:$0xff]
    %v1969 = vld [vmem:[%s1950 + $0x90] sm:$0xff]
    %v1970 = vld [vmem:[%s1950 + $0x98] sm:$0xff]
    %v1971 = vld [vmem:[%s1950 + $0xa0] sm:$0xff]
    %v1972 = vld [vmem:[%s1950 + $0xa8] sm:$0xff]
    %v1973 = vld [vmem:[%s1950 + $0xb0] sm:$0xff]
    %v1974 = vld [vmem:[%s1950 + $0xb8] sm:$0xff]
    %v1975 = vld [vmem:[%s1950 + $0xc0] sm:$0xff]
    %v1976 = vld [vmem:[%s1950 + $0xc8] sm:$0xff]
    %v1977 = vld [vmem:[%s1950 + $0xd0] sm:$0xff]
    %v1978 = vld [vmem:[%s1950 + $0xd8] sm:$0xff]
    %v1979 = vld [vmem:[%s1950 + $0xe0] sm:$0xff]
    %v1980 = vld [vmem:[%s1950 + $0xe8] sm:$0xff]
    %v1981 = vld [vmem:[%s1950 + $0xf0] sm:$0xff]
    %v1982 = vld [vmem:[%s1950 + $0xf8] sm:$0xff]
    %v1983 = vld [vmem:[%s1950 + $0x100] sm:$0xff]
    %v1984 = vld [vmem:[%s1950 + $0x108] sm:$0xff]
    %v1985 = vld [vmem:[%s1950 + $0x110] sm:$0xff]
    %v1986 = vld [vmem:[%s1950 + $0x118] sm:$0xff]
    %v1987 = vld [vmem:[%s1950 + $0x120] sm:$0xff]
    %v1988 = vld [vmem:[%s1950 + $0x128] sm:$0xff]
    %v1989 = vld [vmem:[%s1950 + $0x130] sm:$0xff]
    %v1990 = vld [vmem:[%s1950 + $0x138] sm:$0xff]
    %v1991 = vld [vmem:[%s1950 + $0x140] sm:$0xff]
    %v1992 = vld [vmem:[%s1950 + $0x148] sm:$0xff]
    %v1993 = vld [vmem:[%s1950 + $0x150] sm:$0xff]
    %v1994 = vld [vmem:[%s1950 + $0x158] sm:$0xff]
    %v1995 = vld [vmem:[%s1950 + $0x160] sm:$0xff]
    %v1996 = vld [vmem:[%s1950 + $0x168] sm:$0xff]
    %v1997 = vld [vmem:[%s1950 + $0x170] sm:$0xff]
    %v1998 = vld [vmem:[%s1950 + $0x178] sm:$0xff]
    %v1999 = vld [vmem:[%s1950 + $0x180] sm:$0xff]
    %v2000 = vld [vmem:[%s1950 + $0x188] sm:$0xff]
    %v2001 = vld [vmem:[%s1950 + $0x190] sm:$0xff]
    %v2002 = vld [vmem:[%s1950 + $0x198] sm:$0xff]
    %v2003 = vld [vmem:[%s1950 + $0x1a0] sm:$0xff]
    %v2004 = vld [vmem:[%s1950 + $0x1a8] sm:$0xff]
    %v2005 = vld [vmem:[%s1950 + $0x1b0] sm:$0xff]
    %v2006 = vld [vmem:[%s1950 + $0x1b8] sm:$0xff]
    %v2007 = vld [vmem:[%s1950 + $0x1c0] sm:$0xff]
    %v2008 = vld [vmem:[%s1950 + $0x1c8] sm:$0xff]
    %v2009 = vld [vmem:[%s1950 + $0x1d0] sm:$0xff]
    %v2010 = vld [vmem:[%s1950 + $0x1d8] sm:$0xff]
    %v2011 = vld [vmem:[%s1950 + $0x1e0] sm:$0xff]
    %v2012 = vld [vmem:[%s1950 + $0x1e8] sm:$0xff]
    %v2013 = vld [vmem:[%s1950 + $0x1f0] sm:$0xff]
    %v2014 = vld [vmem:[%s1950 + $0x1f8] sm:$0xff]
    %v2015 = vperm.slane %v1117, 0
    %2016 = vmatpush.msra.mxu0 %v1966
    %2017 = vmatpush.msra.mxu0 %v1965
    %2018 = vmatpush.msra.mxu0 %v1964
    %2019 = vmatpush.msra.mxu0 %v1963
    %2020 = vmatpush.msra.mxu0 %v1962
    %2021 = vmatpush.msra.mxu0 %v1961
    %2022 = vmatpush.msra.mxu0 %v1960
    %2023 = vmatpush.msra.mxu0 %v1959
    %2024 = vmatpush.msra.mxu0 %v1958
    %2025 = vmatpush.msra.mxu0 %v1957
    %2026 = vmatpush.msra.mxu0 %v1956
    %2027 = vmatpush.msra.mxu0 %v1955
    %2028 = vmatpush.msra.mxu0 %v1954
    %2029 = vmatpush.msra.mxu0 %v1953
    %2030 = vmatpush.msra.mxu0 %v1952
    %2031 = vmatpush.msra.mxu0 %v1951
    %2032 = vmatmul.f32.gmra.mxu0 %v1942
    %v2033 = vpop.f32.mrf.mxu0
    %v2034 = vadd.f32 %v2015, %v2033
    %2035 = vmatmul.f32.gmra.mxu0 %v1946
    %v2036 = vpop.f32.mrf.mxu0
    %v2037 = vadd.f32 %v2015, %v2036
    %2038 = vdwg.mxu0
    %2039 = vmatpush.msra.mxu0 %v1982
    %2040 = vmatpush.msra.mxu0 %v1981
    %2041 = vmatpush.msra.mxu0 %v1980
    %2042 = vmatpush.msra.mxu0 %v1979
    %2043 = vmatpush.msra.mxu0 %v1978
    %2044 = vmatpush.msra.mxu0 %v1977
    %2045 = vmatpush.msra.mxu0 %v1976
    %2046 = vmatpush.msra.mxu0 %v1975
    %2047 = vmatpush.msra.mxu0 %v1974
    %2048 = vmatpush.msra.mxu0 %v1973
    %2049 = vmatpush.msra.mxu0 %v1972
    %2050 = vmatpush.msra.mxu0 %v1971
    %2051 = vmatpush.msra.mxu0 %v1970
    %2052 = vmatpush.msra.mxu0 %v1969
    %2053 = vmatpush.msra.mxu0 %v1968
    %2054 = vmatpush.msra.mxu0 %v1967
    %2055 = vmatmul.f32.gmra.mxu0 %v1943
    %v2056 = vpop.f32.mrf.mxu0
    %v2057 = vadd.f32 %v2034, %v2056
    %2058 = vmatmul.f32.gmra.mxu0 %v1947
    %v2059 = vpop.f32.mrf.mxu0
    %v2060 = vadd.f32 %v2037, %v2059
    %2061 = vdwg.mxu0
    %2062 = vmatpush.msra.mxu0 %v1998
    %2063 = vmatpush.msra.mxu0 %v1997
    %2064 = vmatpush.msra.mxu0 %v1996
    %2065 = vmatpush.msra.mxu0 %v1995
    %2066 = vmatpush.msra.mxu0 %v1994
    %2067 = vmatpush.msra.mxu0 %v1993
    %2068 = vmatpush.msra.mxu0 %v1992
    %2069 = vmatpush.msra.mxu0 %v1991
    %2070 = vmatpush.msra.mxu0 %v1990
    %2071 = vmatpush.msra.mxu0 %v1989
    %2072 = vmatpush.msra.mxu0 %v1988
    %2073 = vmatpush.msra.mxu0 %v1987
    %2074 = vmatpush.msra.mxu0 %v1986
    %2075 = vmatpush.msra.mxu0 %v1985
    %2076 = vmatpush.msra.mxu0 %v1984
    %2077 = vmatpush.msra.mxu0 %v1983
    %2078 = vmatmul.f32.gmra.mxu0 %v1944
    %v2079 = vpop.f32.mrf.mxu0
    %v2080 = vadd.f32 %v2057, %v2079
    %2081 = vmatmul.f32.gmra.mxu0 %v1948
    %v2082 = vpop.f32.mrf.mxu0
    %v2083 = vadd.f32 %v2060, %v2082
    %2084 = vdwg.mxu0
    %2085 = vmatpush.msra.mxu0 %v2014
    %2086 = vmatpush.msra.mxu0 %v2013
    %2087 = vmatpush.msra.mxu0 %v2012
    %2088 = vmatpush.msra.mxu0 %v2011
    %2089 = vmatpush.msra.mxu0 %v2010
    %2090 = vmatpush.msra.mxu0 %v2009
    %2091 = vmatpush.msra.mxu0 %v2008
    %2092 = vmatpush.msra.mxu0 %v2007
    %2093 = vmatpush.msra.mxu0 %v2006
    %2094 = vmatpush.msra.mxu0 %v2005
    %2095 = vmatpush.msra.mxu0 %v2004
    %2096 = vmatpush.msra.mxu0 %v2003
    %2097 = vmatpush.msra.mxu0 %v2002
    %2098 = vmatpush.msra.mxu0 %v2001
    %2099 = vmatpush.msra.mxu0 %v2000
    %2100 = vmatpush.msra.mxu0 %v1999
    %2101 = vmatmul.f32.gmra.mxu0 %v1945
    %v2102 = vpop.f32.mrf.mxu0
    %v2103 = vadd.f32 %v2080, %v2102
    %2104 = vmatmul.f32.gmra.mxu0 %v1949
    %v2105 = vpop.f32.mrf.mxu0
    %v2106 = vadd.f32 %v2083, %v2105
    %2107 = vdwg.mxu0
    %v2108 = vadd.f32 %v1821, %v2103
    %v2109 = vadd.f32 %v1822, %v2106
    %v2110 = vsel %vm51, %v2108, 0.0
    %2111 = vadd.xlane.f32.xlu0 %v2110
    %v2112 = vpop.xlane.xlu0 %2111
    %v2113 = vsel %vm51, %v2109, 0.0
    %2114 = vadd.xlane.f32.xlu0 %v2113
    %v2115 = vpop.xlane.xlu0 %2114
    %v2116 = vmul.f32 %v2112, %v718
    %v2117 = vmul.f32 %v2115, %v718
    %v2118 = vsub.f32 %v2108, %v2116
    %v2119 = vsub.f32 %v2109, %v2117
    %v2120 = vmul.f32 %v2118, %v2118
    %v2121 = vmul.f32 %v2119, %v2119
    %v2122 = vsel %vm51, %v2120, 0.0
    %2123 = vadd.xlane.f32.xlu0 %v2122
    %v2124 = vpop.xlane.xlu0 %2123
    %v2125 = vsel %vm51, %v2121, 0.0
    %2126 = vadd.xlane.f32.xlu0 %v2125
    %v2127 = vpop.xlane.xlu0 %2126
    %v2128 = vmul.f32 %v2124, %v718
    %v2129 = vmul.f32 %v2127, %v718
    %v2130 = vadd.f32 %v2128, 1e-05
    %v2131 = vadd.f32 %v2129, 1e-05
    %v2132 = vrsqrt.pop %v2130
    %v2133 = vmul.f32 %v2132, %v2130
    %v2134 = vmul.f32 %v2133, %v2132
    %v2135 = vmul.f32 0.5, %v2134
    %v2136 = vsub.f32 1.5, %v2135
    %v2137 = vmul.f32 %v2132, %v2136
    %vm2138 = vweird.f32 %v2130
    %vm2139 = vweird.f32 %v2132
    %vm2140 = vmor %vm2138, %vm2139
    %v2141 = vsel %vm2140, %v2132, %v2137
    %v2142 = vrsqrt.pop %v2131
    %v2143 = vmul.f32 %v2142, %v2131
    %v2144 = vmul.f32 %v2143, %v2142
    %v2145 = vmul.f32 0.5, %v2144
    %v2146 = vsub.f32 1.5, %v2145
    %v2147 = vmul.f32 %v2142, %v2146
    %vm2148 = vweird.f32 %v2131
    %vm2149 = vweird.f32 %v2142
    %vm2150 = vmor %vm2148, %vm2149
    %v2151 = vsel %vm2150, %v2142, %v2147
    %v2152 = vmul.f32 %v2118, %v2141
    %v2153 = vmul.f32 %v2119, %v2151
    %v2154 = vperm.slane %v1116, 6
    %v2155 = vmul.f32 %v2152, %v2154
    %v2156 = vmul.f32 %v2153, %v2154
    %v2157 = vperm.slane %v1116, 7
    %v2158 = vadd.f32 %v2155, %v2157
    %v2159 = vadd.f32 %v2156, %v2157
    %v2160 = vld [vmem:[%s5] sm:$0xff]
    %v2161 = vld [vmem:[%s5 + $0x8] sm:$0xff]
    %v2162 = vld [vmem:[%s5 + $0x10] sm:$0xff]
    %v2163 = vld [vmem:[%s5 + $0x18] sm:$0xff]
    %v2164 = vld [vmem:[%s6] sm:$0x1]
    %v2166 = vperm.slane %v2164, 0
    %v2169 = vsel %vm51, %v2158, 0
    %v2172 = vsel %vm51, %v2159, 0
    %2174 = vmatpush.msra.mxu0 0.0
    %2175 = vmatpush.msra.mxu0 0.0
    %2176 = vmatpush.msra.mxu0 0.0
    %2177 = vmatpush.msra.mxu0 0.0
    %2178 = vmatpush.msra.mxu0 0.0
    %2179 = vmatpush.msra.mxu0 0.0
    %2180 = vmatpush.msra.mxu0 0.0
    %2181 = vmatpush.msra.mxu0 0.0
    %2182 = vmatpush.msra.mxu0 0.0
    %2183 = vmatpush.msra.mxu0 0.0
    %2184 = vmatpush.msra.mxu0 0.0
    %2185 = vmatpush.msra.mxu0 0.0
    %2186 = vmatpush.msra.mxu0 %v2163
    %2187 = vmatpush.msra.mxu0 %v2162
    %2188 = vmatpush.msra.mxu0 %v2161
    %2189 = vmatpush.msra.mxu0 %v2160
    %2190 = vmatmul.f32.gmra.mxu0 %v2169
    %v2191 = vpop.f32.mrf.mxu0
    %v2192 = vadd.f32 %v2166, %v2191
    %2193 = vmatmul.f32.gmra.mxu0 %v2172
    %v2194 = vpop.f32.mrf.mxu0
    %v2195 = vadd.f32 %v2166, %v2194
    %2196 = vdwg.mxu0
    %2197 = vst [vmem:[#allocation2] sm:$0xff] %v2192
    %2198 = vst [vmem:[#allocation2 + $0x8] sm:$0xff] %v2195
    // Predicated region
    $region30: #{tpu_custom_call.1} parent=1 // pred_check
      _
    $region31: #{tpu_custom_call.1} parent=1 // pred_check_branch
      %2200 = sbr.rel (0) target = $region33
    $region32: #{tpu_custom_call.1} parent=1 // pred_region
      %2202 = vsyncadd [#allocation3], 0
      %s2203 = sshll.u32 [#allocation2], 4
      %s2204 = int_to_ptr.vmem [resolvable:$true] %s2203
      %s2205 = sshll.u32 %s7, 4
      %s2206 = int_to_ptr.hbm [resolvable:$true] %s2205
      %2211 = dma.vmem_to_hbm [thread:$0]  %s2204, 256, %s2206, [#allocation3], 128, 128, 8
    $region33: #{tpu_custom_call.1} parent=1 // pred_fallthru
      _
    // Predicated region
    $region34: #{tpu_custom_call.1} parent=1 // pred_check
      _
    $region35: #{tpu_custom_call.1} parent=1 // pred_check_branch
      %2213 = sbr.rel (0) target = $region37
    $region36: #{tpu_custom_call.1} parent=1 // pred_region
      %2215 = dma.done [#allocation3], 256
    $region37: #{tpu_custom_call.1} parent=1 // pred_fallthru
      _
    %2216 = vsyncpa [#allocation3], 1

</llo_original>
